<compile_context>
chip_gen: v7x
topology: tpu7x:2x2x1
jax: 0.10.0
libtpu: 0.0.40
codegen_flags: <defaults>
</compile_context>

<pallas_src>
import functools

import jax
import jax.numpy as jnp
from jax.experimental import pallas as pl
from jax.experimental.pallas import tpu as pltpu

GCONV_DIM = 128
GCONV_HIDDEN = 512
POINT_FEAT_DIM = 512
OBJ_CAT_NUM = 160
PRED_CAT_NUM = 27


# ----------------------------- parameter init ------------------------------ #

def _init_w(key, din, dout, fan_in=None, dtype=jnp.bfloat16):
    fan = float(din if fan_in is None else fan_in)
    w = jax.random.normal(key, (din, dout), jnp.float32) / jnp.sqrt(fan)
    return w.astype(dtype)


def _zeros_b(dout):
    return jnp.zeros((1, dout), jnp.float32)


def _pointnet_params(key, cin, d1=64, d2=POINT_FEAT_DIM, cpad=8):
    # TODO(synk): PointNextEncoder source is not available; stand-in is a
    # 2-layer shared point MLP + max-pool producing the same 512-d features.
    k1, k2 = jax.random.split(key)
    w1 = jax.random.normal(k1, (cin, d1), jnp.float32) / jnp.sqrt(float(cin))
    # zero-pad the 3/4 input channels to 8 so layer-1 is one MXU matmul
    w1_pad = jnp.zeros((cpad, d1), jnp.float32).at[:cin, :].set(w1)
    return dict(
        w1=w1_pad.astype(jnp.bfloat16),   # (8, 64)
        b1=_zeros_b(d1),
        w2=_init_w(k2, d1, d2),           # (64, 512) bf16
        b2=_zeros_b(d2),
        cin=cin,
    )


def _gconv_layer_params(key, din, dout, hidden):
    ks = jax.random.split(key, 6)
    fan1 = 3 * din   # matches the fan-in of the concatenated [s|p|o] Linear
    w1s = _init_w(ks[0], din, hidden, fan_in=fan1)
    w1o = _init_w(ks[2], din, hidden, fan_in=fan1)
    return dict(
        # subject/object projections fused into one matmul: obj @ [W1s | W1o]
        w1so=jnp.concatenate([w1s, w1o], axis=1),      # (din, 2*hidden)
        w1p=_init_w(ks[1], din, hidden, fan_in=fan1),
        b1=_zeros_b(hidden),
        w2=_init_w(ks[3], hidden, 2 * hidden + dout),
        b2=_zeros_b(2 * hidden + dout),
        v1w=_init_w(ks[4], hidden, hidden),
        v1b=_zeros_b(hidden),
        v2w=_init_w(ks[5], hidden, dout),
        v2b=_zeros_b(dout),
    )


def _classifier_params(key, din, hidden, nout):
    k1, k2 = jax.random.split(key)
    pad = ((nout + 127) // 128) * 128         # lane-dense padded output width
    w2 = _init_w(k2, hidden, nout)
    w2p = jnp.zeros((hidden, pad), jnp.bfloat16).at[:, :nout].set(w2)
    return dict(w1=_init_w(k1, din, hidden), b1=_zeros_b(hidden),
                w2=w2p, b2=jnp.zeros((1, pad), jnp.float32), nout=nout)


def init_sgpn_params(key, gconv_dim=GCONV_DIM, hidden=GCONV_HIDDEN,
                     num_layers=5, obj_cat=OBJ_CAT_NUM, pred_cat=PRED_CAT_NUM):
    keys = jax.random.split(key, 6)
    obj_pn = _pointnet_params(keys[0], 3)
    rel_pn = _pointnet_params(keys[1], 4)
    gconv0 = _gconv_layer_params(keys[2], POINT_FEAT_DIM, gconv_dim, hidden)
    layer_keys = jax.random.split(keys[3], num_layers - 1)
    layers = [_gconv_layer_params(k, gconv_dim, gconv_dim, hidden) for k in layer_keys]
    # stack layers 1..4 so the fused kernel takes a fixed small arg list
    gconv_net = {name: jnp.stack([lyr[name] for lyr in layers], axis=0)
                 for name in layers[0]}
    obj_cls = _classifier_params(keys[4], gconv_dim, 256, obj_cat)
    rel_cls = _classifier_params(keys[5], gconv_dim, 256, pred_cat)
    return {'obj_pointnet': obj_pn, 'rel_pointnet': rel_pn,
            'gconv0': gconv0, 'gconv_net': gconv_net,
            'obj_classifier': obj_cls, 'rel_classifier': rel_cls}


# ------------------------------ point encoder ------------------------------- #

def _point_encoder_kernel(pts_ref, w1_ref, b1_ref, w2_ref, b2_ref, out_ref,
                          *, point_chunk):
    bm, P, C = pts_ref.shape
    w1 = w1_ref[...]                       # (8, 64)  bf16
    b1 = b1_ref[...]                       # (1, 64)  f32
    w2 = w2_ref[...]                       # (64, 512) bf16
    b2 = b2_ref[...]                       # (1, 512) f32

    # Layer-2 + max-pool in P-chunks with a running max accumulator so peak
    # VMEM stays flat at realistic point counts (no (bm*P, 512) f32 slab).
    acc = None
    for s in range(0, P, point_chunk):
        x = pts_ref[:, s:s + point_chunk, :].astype(jnp.bfloat16)
        x = x.reshape(bm * point_chunk, C)                       # (bm*pc, 8)
        # Layer 1: (bm*pc, 8) @ (8, 64) on the MXU (channels zero-padded to 8)
        h = jnp.maximum(jnp.dot(x, w1, preferred_element_type=jnp.float32) + b1,
                        0.0).astype(jnp.bfloat16)
        # Layer 2: 64 -> 512 on the MXU, ReLU, per-chunk max over the points
        h2 = jnp.maximum(jnp.dot(h, w2, preferred_element_type=jnp.float32) + b2,
                         0.0)
        cmax = jnp.max(h2.reshape(bm, point_chunk, -1), axis=1)  # (bm, 512)
        acc = cmax if acc is None else jnp.maximum(acc, cmax)
    out_ref[...] = acc.astype(out_ref.dtype)


def point_encode(pts, params, block_m=8, max_point_chunk=256):
    """pts: (M, P, C) f32 -> (M, 512) bf16 per-cloud features."""
    w1, b1, w2, b2 = params['w1'], params['b1'], params['w2'], params['b2']
    M, P, C = pts.shape
    Cpad = w1.shape[0]                     # 8
    D2 = w2.shape[1]                       # 512

    # pad channels to the zero-padded layer-1 weight width (MXU K=8)
    if C < Cpad:
        pts = jnp.pad(pts, ((0, 0), (0, 0), (0, Cpad - C)))
    # pad cloud count to a multiple of block_m: uniform blocks, no bm=M fallback
    Mp = pl.cdiv(M, block_m) * block_m
    if Mp != M:
        pts = jnp.pad(pts, ((0, Mp - M), (0, 0), (0, 0)))
    # P-chunk size for layer-2 + running max
    pc = next((c for c in (512, 256, 128, 64, 32, 16, 8)
               if c <= max_point_chunk and P % c == 0), P)

    full = lambda a: pl.BlockSpec(a.shape, lambda i, _nd=a.ndim: (0,) * _nd)
    out = pl.pallas_call(
        functools.partial(_point_encoder_kernel, point_chunk=pc),
        out_shape=jax.ShapeDtypeStruct((Mp, D2), jnp.bfloat16),
        grid=(Mp // block_m,),
        in_specs=[pl.BlockSpec((block_m, P, Cpad), lambda i: (i, 0, 0)),
                  full(w1), full(b1), full(w2), full(b2)],
        out_specs=pl.BlockSpec((block_m, D2), lambda i: (i, 0)),
        compiler_params=pltpu.CompilerParams(
            dimension_semantics=("parallel",)),
    )(pts, w1, b1, w2, b2)
    return out[:M]


# -------------------- fused gconv (5 layers) + classifiers ------------------ #

def _fused_gconv_cls_kernel(
        obj_in_ref, pred_in_ref, oh_s_ref, oh_o_ref, scat_s_ref, scat_o_ref,
        inv_cnt_ref,
        l0_w1so_ref, l0_w1p_ref, l0_b1_ref, l0_w2_ref, l0_b2_ref,
        l0_v1w_ref, l0_v1b_ref, l0_v2w_ref, l0_v2b_ref,
        ln_w1so_ref, ln_w1p_ref, ln_b1_ref, ln_w2_ref, ln_b2_ref,
        ln_v1w_ref, ln_v1b_ref, ln_v2w_ref, ln_v2b_ref,
        oc_w1_ref, oc_b1_ref, oc_w2_ref, oc_b2_ref,
        rc_w1_ref, rc_b1_ref, rc_w2_ref, rc_b2_ref,
        obj_out_ref, rel_out_ref):
    H = l0_v1w_ref.shape[0]        # 512
    Dout = l0_v2w_ref.shape[1]     # 128

    # per-scene edge structure (built on the host, bf16 0/1 is exact)
    oh_s = oh_s_ref[0]             # (T, O) bf16 gather (subject)
    oh_o = oh_o_ref[0]             # (T, O) bf16 gather (object)
    scat_s = scat_s_ref[0]         # (O, T) bf16 transposed scatter (subject)
    scat_o = scat_o_ref[0]         # (O, T) bf16 transposed scatter (object)
    inv_cnt = inv_cnt_ref[0]       # (O, 1) f32 exact 1/clamp(count,1)

    def gconv_layer(obj, pred, w1so, w1p, b1, w2, b2, v1w, v1b, v2w, v2b):
        # net1 layer 1, split form of the concatenated [s|p|o] Linear:
        # project at O rows (single fused matmul), gather at T rows.
        proj = jnp.dot(obj, w1so,
                       preferred_element_type=jnp.float32).astype(jnp.bfloat16)
        proj_s = proj[:, :H]
        proj_o = proj[:, H:]
        h = (jnp.dot(oh_s, proj_s, preferred_element_type=jnp.float32)
             + jnp.dot(pred, w1p, preferred_element_type=jnp.float32)
             + jnp.dot(oh_o, proj_o, preferred_element_type=jnp.float32)
             + b1)
        h = jnp.maximum(h, 0.0).astype(jnp.bfloat16)                 # (T, H)
        # net1 layer 2
        t = jnp.dot(h, w2, preferred_element_type=jnp.float32) + b2
        t = jnp.maximum(t, 0.0).astype(jnp.bfloat16)                 # (T, 2H+Dout)
        new_s = t[:, :H]
        new_p = t[:, H:H + Dout]
        new_o = t[:, H + Dout:]
        # scatter-add via transposed one-hot matmuls (f32 accumulate), then
        # the exact 'avg' scaling in f32 (clamped counts, as in sg2im).
        pooled = (jnp.dot(scat_s, new_s, preferred_element_type=jnp.float32)
                  + jnp.dot(scat_o, new_o, preferred_element_type=jnp.float32))
        pooled = (pooled * inv_cnt).astype(jnp.bfloat16)             # (O, H)
        # net2: Linear -> ReLU -> Linear -> ReLU
        g = jnp.maximum(
            jnp.dot(pooled, v1w, preferred_element_type=jnp.float32) + v1b, 0.0)
        new_obj = jnp.maximum(
            jnp.dot(g.astype(jnp.bfloat16), v2w,
                    preferred_element_type=jnp.float32) + v2b, 0.0)
        return new_obj.astype(jnp.bfloat16), new_p

    # layer 0 (512 -> 128)
    obj_h, pred_h = gconv_layer(
        obj_in_ref[0], pred_in_ref[0],
        l0_w1so_ref[...], l0_w1p_ref[...], l0_b1_ref[...],
        l0_w2_ref[...], l0_b2_ref[...],
        l0_v1w_ref[...], l0_v1b_ref[...], l0_v2w_ref[...], l0_v2b_ref[...])

    # layers 1..4 (128 -> 128), unrolled with static slices of stacked weights
    for i in range(ln_w1so_ref.shape[0]):
        obj_h, pred_h = gconv_layer(
            obj_h, pred_h,
            ln_w1so_ref[i], ln_w1p_ref[i], ln_b1_ref[i],
            ln_w2_ref[i], ln_b2_ref[i],
            ln_v1w_ref[i], ln_v1b_ref[i], ln_v2w_ref[i], ln_v2b_ref[i])

    # classifiers: build_mlp default applies ReLU after the final Linear too
    # (matches the reference; lane-dense padded outputs, sliced in the wrapper)
    go = jnp.maximum(jnp.dot(obj_h, oc_w1_ref[...],
                             preferred_element_type=jnp.float32)
                     + oc_b1_ref[...], 0.0)
    obj_out_ref[0] = jnp.maximum(
        jnp.dot(go.astype(jnp.bfloat16), oc_w2_ref[...],
                preferred_element_type=jnp.float32) + oc_b2_ref[...], 0.0)
    gr = jnp.maximum(jnp.dot(pred_h, rc_w1_ref[...],
                             preferred_element_type=jnp.float32)
                     + rc_b1_ref[...], 0.0)
    rel_out_ref[0] = jnp.maximum(
        jnp.dot(gr.astype(jnp.bfloat16), rc_w2_ref[...],
                preferred_element_type=jnp.float32) + rc_b2_ref[...], 0.0)


def fused_gconv_classify(obj_feats, pred_feats, oh_s, oh_o, scat_s, scat_o,
                         inv_cnt, params):
    """obj_feats: (B, O, 512) bf16, pred_feats: (B, T, 512) bf16."""
    g0 = params['gconv0']
    gn = params['gconv_net']
    oc = params['obj_classifier']
    rc = params['rel_classifier']

    B, O, _ = obj_feats.shape
    T = pred_feats.shape[1]
    obj_pad_w = oc['w2'].shape[1]
    rel_pad_w = rc['w2'].shape[1]

    args = [
        obj_feats, pred_feats, oh_s, oh_o, scat_s, scat_o, inv_cnt,
        g0['w1so'], g0['w1p'], g0['b1'], g0['w2'], g0['b2'],
        g0['v1w'], g0['v1b'], g0['v2w'], g0['v2b'],
        gn['w1so'], gn['w1p'], gn['b1'], gn['w2'], gn['b2'],
        gn['v1w'], gn['v1b'], gn['v2w'], gn['v2b'],
        oc['w1'], oc['b1'], oc['w2'], oc['b2'],
        rc['w1'], rc['b1'], rc['w2'], rc['b2'],
    ]

    # per-scene blocks for activations / edge structure; constant index_maps for
    # weights so they are loaded once and stay VMEM-resident across scenes.
    scene3 = lambda a: pl.BlockSpec((1,) + a.shape[1:],
                                    lambda i: (i,) + (0,) * (a.ndim - 1))
    const = lambda a: pl.BlockSpec(a.shape, lambda i, _nd=a.ndim: (0,) * _nd)
    in_specs = [scene3(a) for a in args[:7]] + [const(a) for a in args[7:]]

    obj_pad, rel_pad = pl.pallas_call(
        _fused_gconv_cls_kernel,
        out_shape=(jax.ShapeDtypeStruct((B, O, obj_pad_w), jnp.float32),
                   jax.ShapeDtypeStruct((B, T, rel_pad_w), jnp.float32)),
        grid=(B,),
        in_specs=in_specs,
        out_specs=(pl.BlockSpec((1, O, obj_pad_w), lambda i: (i, 0, 0)),
                   pl.BlockSpec((1, T, rel_pad_w), lambda i: (i, 0, 0))),
        compiler_params=pltpu.CompilerParams(
            dimension_semantics=("parallel",),
            # ~12 MB bf16 weights (<=~24 MB if double-buffered) + small
            # per-scene activations: 48 MiB leaves >=16 MiB headroom on v7x
            # (64 MiB physical) and is far under v5e/v6e's 128 MiB.
            vmem_limit_bytes=48 * 1024 * 1024),
    )(*args)
    # slice the lane-dense padded logits back to the real class counts
    return obj_pad[:, :, :oc['nout']], rel_pad[:, :, :rc['nout']]


# -------------------------------- SGPN forward ------------------------------ #

def build_edge_structures(edges, num_obj):
    """Per-scene gather / transposed-scatter one-hots and exact 1/count."""
    B, T, _ = edges.shape
    e = edges.astype(jnp.int32)
    cols = jnp.arange(num_obj, dtype=jnp.int32)[None, None, :]
    oh_s = (e[:, :, 0:1] == cols).astype(jnp.float32)        # (B, T, O)
    oh_o = (e[:, :, 1:2] == cols).astype(jnp.float32)        # (B, T, O)
    # 'avg' pooling counts (clamped at 1, as in sg2im), exact f32 reciprocal
    counts = jnp.sum(oh_s + oh_o, axis=1)                    # (B, O)
    inv_counts = (1.0 / jnp.maximum(counts, 1.0))[..., None] # (B, O, 1) f32
    scat_s = jnp.swapaxes(oh_s, 1, 2).astype(jnp.bfloat16)   # (B, O, T)
    scat_o = jnp.swapaxes(oh_o, 1, 2).astype(jnp.bfloat16)
    return (oh_s.astype(jnp.bfloat16), oh_o.astype(jnp.bfloat16),
            scat_s, scat_o, inv_counts)


def sgpn_forward(params, data_dict):
    objects_pc = data_dict['objects_pc']                # (B*O, P, 3)
    predicate_pc_flag = data_dict['predicate_pc_flag']  # (B*T, P, 4) (xyz + flag)
    edges = data_dict['edges']                          # (B, T, 2) int32, local idx
    B = data_dict['objects_id'].shape[0]
    # Python ints here to avoid a device->host sync per forward
    object_num = int(data_dict['aligned_obj_num'])
    predicate_num = int(data_dict['aligned_rel_num'])

    # point encoders (stand-in for PointNextEncoder -> 512-d per cloud)
    obj_vecs = point_encode(objects_pc, params['obj_pointnet'])          # (B*O, 512)
    pred_vecs = point_encode(predicate_pc_flag, params['rel_pointnet'])  # (B*T, 512)
    obj_vecs = obj_vecs.reshape(B, object_num, -1)
    pred_vecs = pred_vecs.reshape(B, predicate_num, -1)

    # per-scene edge one-hots / scatter matrices (tiny host-side XLA ops).
    # Note: like the reference forward, all T edge slots per scene are
    # processed (no padded-edge masking happens in the reference either).
    oh_s, oh_o, scat_s, scat_o, inv_cnt = build_edge_structures(edges, object_num)

    # one fused kernel: gconv layer 0 + layers 1..4 + both classifiers,
    # gridded over scenes with weights resident in VMEM.
    obj_logits, rel_logits = fused_gconv_classify(
        obj_vecs, pred_vecs, oh_s, oh_o, scat_s, scat_o, inv_cnt, params)

    # (B, O, n_obj) / (B, T, n_rel): indexable per scene like the reference's
    # per-scene lists, without 2*B tiny slice dispatches.
    data_dict['objects_predict'] = obj_logits
    data_dict['predicate_predict'] = rel_logits
    return data_dict


# ----------------------------------- main ----------------------------------- #

if __name__ == "__main__":
    key = jax.random.PRNGKey(0)
    B, O, T, P = 2, 8, 16, 32
    k_params, k_obj, k_rel, k_edges = jax.random.split(key, 4)

    params = init_sgpn_params(k_params)

    data_dict = {
        'objects_id': jnp.arange(B * O, dtype=jnp.int32).reshape(B, O),
        'objects_pc': jax.random.normal(k_obj, (B * O, P, 3), jnp.float32),
        'aligned_obj_num': O,                      # Python int (no host sync)
        'predicate_pc_flag': jax.random.normal(k_rel, (B * T, P, 4), jnp.float32),
        'aligned_rel_num': T,                      # Python int (no host sync)
        'edges': jax.random.randint(k_edges, (B, T, 2), 0, O, dtype=jnp.int32),
    }

    out = sgpn_forward(params, data_dict)
    jax.block_until_ready((out['objects_predict'], out['predicate_predict']))
    assert out['objects_predict'][0].shape == (O, OBJ_CAT_NUM)
    assert out['predicate_predict'][0].shape == (T, PRED_CAT_NUM)
    print("KERNEL_OK")
</pallas_src>

<mosaic_0001>
module attributes {stable_mosaic.version = 11 : i64} {
  func.func @_point_encoder_kernel(%arg0: i32, %arg1: memref<8x32x8xf32, #tpu.memory_space<vmem>>, %arg2: memref<8x64xbf16, #tpu.memory_space<vmem>>, %arg3: memref<1x64xf32, #tpu.memory_space<vmem>>, %arg4: memref<64x512xbf16, #tpu.memory_space<vmem>>, %arg5: memref<1x512xf32, #tpu.memory_space<vmem>>, %arg6: memref<8x512xbf16, #tpu.memory_space<vmem>>) attributes {dimension_semantics = [#tpu.dimension_semantics<parallel>], iteration_bounds = array<i64: 2>, scalar_prefetch = 0 : i64, scratch_operands = 0 : i64, tpu.core_type = #tpu.core_type<tc>, window_params = [{transform_indices = @transform_0, window_bounds = array<i64: 8, 32, 8>}, {pipeline_mode = #tpu.pipeline_mode<synchronous>, transform_indices = @transform_1, window_bounds = array<i64: 8, 64>}, {pipeline_mode = #tpu.pipeline_mode<synchronous>, transform_indices = @transform_2, window_bounds = array<i64: 1, 64>}, {pipeline_mode = #tpu.pipeline_mode<synchronous>, transform_indices = @transform_3, window_bounds = array<i64: 64, 512>}, {pipeline_mode = #tpu.pipeline_mode<synchronous>, transform_indices = @transform_4, window_bounds = array<i64: 1, 512>}, {transform_indices = @transform_5, window_bounds = array<i64: 8, 512>}]} {
    %c0 = arith.constant 0 : index
    %c0_0 = arith.constant 0 : index
    %0 = vector.load %arg2[%c0, %c0_0] : memref<8x64xbf16, #tpu.memory_space<vmem>>, vector<8x64xbf16>
    %c0_1 = arith.constant 0 : index
    %c0_2 = arith.constant 0 : index
    %1 = vector.load %arg3[%c0_1, %c0_2] : memref<1x64xf32, #tpu.memory_space<vmem>>, vector<1x64xf32>
    %c0_3 = arith.constant 0 : index
    %c0_4 = arith.constant 0 : index
    %2 = vector.load %arg4[%c0_3, %c0_4] : memref<64x512xbf16, #tpu.memory_space<vmem>>, vector<64x512xbf16>
    %c0_5 = arith.constant 0 : index
    %c0_6 = arith.constant 0 : index
    %3 = vector.load %arg5[%c0_5, %c0_6] : memref<1x512xf32, #tpu.memory_space<vmem>>, vector<1x512xf32>
    %c0_7 = arith.constant 0 : index
    %c0_8 = arith.constant 0 : index
    %c0_9 = arith.constant 0 : index
    %4 = vector.load %arg1[%c0_7, %c0_8, %c0_9] : memref<8x32x8xf32, #tpu.memory_space<vmem>>, vector<8x32x8xf32>
    %5 = arith.truncf %4 : vector<8x32x8xf32> to vector<8x32x8xbf16>
    %6 = vector.shape_cast %5 : vector<8x32x8xbf16> to vector<256x8xbf16>
    %cst = arith.constant dense<0.000000e+00> : vector<256x64xf32>
    %7 = tpu.matmul %6, %0, %cst {dimension_numbers = #tpu.dot_dimension_numbers<[1], [0], [0], [1], [0, 0, 1, 1], [], []>} : vector<256x8xbf16>, vector<8x64xbf16>, vector<256x64xf32> -> vector<256x64xf32>
    %8 = vector.broadcast %1 : vector<1x64xf32> to vector<256x64xf32>
    %9 = arith.addf %7, %8 : vector<256x64xf32>
    %cst_10 = arith.constant 0.000000e+00 : f32
    %10 = vector.broadcast %cst_10 : f32 to vector<256x64xf32>
    %11 = arith.maximumf %9, %10 : vector<256x64xf32>
    %12 = arith.truncf %11 : vector<256x64xf32> to vector<256x64xbf16>
    %cst_11 = arith.constant dense<0.000000e+00> : vector<256x512xf32>
    %13 = tpu.matmul %12, %2, %cst_11 {dimension_numbers = #tpu.dot_dimension_numbers<[1], [0], [0], [1], [0, 0, 1, 1], [], []>} : vector<256x64xbf16>, vector<64x512xbf16>, vector<256x512xf32> -> vector<256x512xf32>
    %14 = vector.broadcast %3 : vector<1x512xf32> to vector<256x512xf32>
    %15 = arith.addf %13, %14 : vector<256x512xf32>
    %cst_12 = arith.constant 0.000000e+00 : f32
    %16 = vector.broadcast %cst_12 : f32 to vector<256x512xf32>
    %17 = arith.maximumf %15, %16 : vector<256x512xf32>
    %18 = vector.shape_cast %17 : vector<256x512xf32> to vector<8x32x512xf32>
    %cst_13 = arith.constant dense<0xFF800000> : vector<8x512xf32>
    %19 = vector.multi_reduction <maximumf>, %18, %cst_13 [1] : vector<8x32x512xf32> to vector<8x512xf32>
    %20 = arith.truncf %19 : vector<8x512xf32> to vector<8x512xbf16>
    %c0_14 = arith.constant 0 : index
    %c0_15 = arith.constant 0 : index
    %21 = vector.load %arg6[%c0_14, %c0_15] : memref<8x512xbf16, #tpu.memory_space<vmem>>, vector<8x512xbf16>
    tpu.vector_store %arg6[%c0_14, %c0_15], %20 {strides = array<i32>} : memref<8x512xbf16, #tpu.memory_space<vmem>>, vector<8x512xbf16>,
    return
  }
  func.func @transform_0(%arg0: i32) -> (i32, i32, i32) {
    %c0_i32 = arith.constant 0 : i32
    %c0_i32_0 = arith.constant 0 : i32
    %c0_i32_1 = arith.constant 0 : i32
    return %arg0, %c0_i32, %c0_i32_0 : i32, i32, i32
  }
  func.func @transform_1(%arg0: i32) -> (i32, i32) {
    %c0_i32 = arith.constant 0 : i32
    %c0_i32_0 = arith.constant 0 : i32
    %c0_i32_1 = arith.constant 0 : i32
    return %c0_i32, %c0_i32_0 : i32, i32
  }
  func.func @transform_2(%arg0: i32) -> (i32, i32) {
    %c0_i32 = arith.constant 0 : i32
    %c0_i32_0 = arith.constant 0 : i32
    %c0_i32_1 = arith.constant 0 : i32
    return %c0_i32, %c0_i32_0 : i32, i32
  }
  func.func @transform_3(%arg0: i32) -> (i32, i32) {
    %c0_i32 = arith.constant 0 : i32
    %c0_i32_0 = arith.constant 0 : i32
    %c0_i32_1 = arith.constant 0 : i32
    return %c0_i32, %c0_i32_0 : i32, i32
  }
  func.func @transform_4(%arg0: i32) -> (i32, i32) {
    %c0_i32 = arith.constant 0 : i32
    %c0_i32_0 = arith.constant 0 : i32
    %c0_i32_1 = arith.constant 0 : i32
    return %c0_i32, %c0_i32_0 : i32, i32
  }
  func.func @transform_5(%arg0: i32) -> (i32, i32) {
    %c0_i32 = arith.constant 0 : i32
    %c0_i32_0 = arith.constant 0 : i32
    return %arg0, %c0_i32 : i32, i32
  }
}

</mosaic_0001>

<llo_original>
// kernel: tpu_custom_call.1
$region0: #{tpu_custom_call.1}
  #allocation0 [shape = 'u32[]', space=smem, size = 0x4, offset = 0x4, fixed_abs, tag = 'smem constant byte address 0x4 - core index']
  #allocation1 [shape = 'u32[144,128]{1,0:T(1,128)}', space=vmem, size = 0x12000, scoped, tag = 'internal scratch']
  %s0 = inlined_call_operand.vmem [shape: f32[16,32,8], index: 0, kind: input, shape index: {}]
  %s1 = inlined_call_operand.vmem [shape: bf16[8,64], index: 1, kind: input, shape index: {}]
  %s2 = inlined_call_operand.vmem [shape: f32[1,64], index: 2, kind: input, shape index: {}]
  %s3 = inlined_call_operand.vmem [shape: bf16[64,512], index: 3, kind: input, shape index: {}]
  %s4 = inlined_call_operand.vmem [shape: f32[1,512], index: 4, kind: input, shape index: {}]
  %s5 = inlined_call_operand.hbm [shape: bf16[16,512], index: 5, kind: output, shape index: {}]
  %s6 = sld [smem:[#allocation0]]
  $region53: #{tpu_custom_call.1} parent=0
    _
  %s8 = ssub.s32 1, %s6
  %s9 = scalar_select 0, %s8, %s6
  $region1: #{tpu_custom_call.1} parent=0
    #allocation2 [shape = 'u8[16384]{0}', space=vmem, size = 0x4000, scoped, tag = 'output window, operand 0']
    #allocation3 [shape = 's32[2]{0}', space=sflag, size = 0x8, scoped, tag = 'scoped memory for tpu_custom_call.1']
    %10 = vsyncpa [#allocation3], 0
    %s11 = scalar_lea.sflag [#allocation3], 1
    %12 = vsyncpa %s11, 0
    loop: start=0, step=1, limit=4
    $region2: #{tpu_custom_call.1} parent=1 // loop_pre_header
      _
    $region3: #{tpu_custom_call.1} parent=1 // loop_header
      %s14 = sphi 0, %s18
      %p15 = scmp.ge.s32.totalorder %s14, 4
      %s24 = sphi 0, %s26
      %s27 = sphi 0, %s24
      %s28 = sphi 0, %s27
      %s44 = sphi 0, %s28
      %s48 = sphi 0, %s48
      %s50 = sphi 0, %s48
      %s51 = sphi 0, %s50
      %s65 = sphi 0, %s51
      %s69 = sphi 0, %s69
      %s71 = sphi 0, %s69
      %s72 = sphi 0, %s71
      %s86 = sphi 0, %s72
      %s90 = sphi 0, %s90
      %s92 = sphi 0, %s90
      %s93 = sphi 0, %s92
      %s107 = sphi 0, %s93
      %s111 = sphi 0, %s111
      %s113 = sphi 0, %s111
      %s114 = sphi 0, %s113
      %s128 = sphi 0, %s114
      %s134 = sphi 0, %s136
      %s137 = sphi 0, %s134
      %s138 = sphi 0, %s137
      %s154 = sphi 0, %s138
    $region4: #{tpu_custom_call.1} parent=1 // loop_header_branch
      %17 = sbr.rel (%p15) target = $region8
    $region5: #{tpu_custom_call.1} parent=1 // loop_body
      %s19 = ssub.s32 %s14, 1
      %s20 = ssub.s32 %s14, 2
      %s21 = sadd.s32 %s14, 1
      %s22 = ssub.s32 %s14, %s21
      %p23 = scmp.eq.s32.totalorder %s22, 0
      %s25 = sadd.s32 %s24, 1
      %s26 = scalar_select %p23, %s24, %s25
      %p29 = pneg %p23
      %p30 = scmp.eq.s32.totalorder %s14, 1
      %p31 = por %p29, %p30
      %p32 = scmp.ne.s32.totalorder %s24, %s27
      %p33 = scmp.eq.s32.totalorder %s14, 0
      %p34 = por %p32, %p33
      %p35 = scmp.ne.s32.totalorder %s24, %s27
      %p36 = scmp.eq.s32.totalorder %s19, 1
      %p37 = por %p35, %p36
      %p38 = scmp.ne.s32.totalorder %s27, %s28
      %p39 = scmp.eq.s32.totalorder %s19, 0
      %p40 = por %p38, %p39
      %p41 = scmp.ne.s32.totalorder %s27, %s28
      %p42 = scmp.eq.s32.totalorder %s20, 1
      %p43 = por %p41, %p42
      %p45 = scmp.ne.s32.totalorder %s28, %s44
      %p46 = scmp.eq.s32.totalorder %s20, 0
      %p47 = por %p45, %p46
      %s49 = sadd.s32 %s48, 1
      %p52 = scmp.eq.s32.totalorder %s14, 1
      %p53 = scmp.ne.s32.totalorder %s48, %s50
      %p54 = scmp.eq.s32.totalorder %s14, 0
      %p55 = por %p53, %p54
      %p56 = scmp.ne.s32.totalorder %s48, %s50
      %p57 = scmp.eq.s32.totalorder %s19, 1
      %p58 = por %p56, %p57
      %p59 = scmp.ne.s32.totalorder %s50, %s51
      %p60 = scmp.eq.s32.totalorder %s19, 0
      %p61 = por %p59, %p60
      %p62 = scmp.ne.s32.totalorder %s50, %s51
      %p63 = scmp.eq.s32.totalorder %s20, 1
      %p64 = por %p62, %p63
      %p66 = scmp.ne.s32.totalorder %s51, %s65
      %p67 = scmp.eq.s32.totalorder %s20, 0
      %p68 = por %p66, %p67
      %s70 = sadd.s32 %s69, 1
      %p73 = scmp.eq.s32.totalorder %s14, 1
      %p74 = scmp.ne.s32.totalorder %s69, %s71
      %p75 = scmp.eq.s32.totalorder %s14, 0
      %p76 = por %p74, %p75
      %p77 = scmp.ne.s32.totalorder %s69, %s71
      %p78 = scmp.eq.s32.totalorder %s19, 1
      %p79 = por %p77, %p78
      %p80 = scmp.ne.s32.totalorder %s71, %s72
      %p81 = scmp.eq.s32.totalorder %s19, 0
      %p82 = por %p80, %p81
      %p83 = scmp.ne.s32.totalorder %s71, %s72
      %p84 = scmp.eq.s32.totalorder %s20, 1
      %p85 = por %p83, %p84
      %p87 = scmp.ne.s32.totalorder %s72, %s86
      %p88 = scmp.eq.s32.totalorder %s20, 0
      %p89 = por %p87, %p88
      %s91 = sadd.s32 %s90, 1
      %p94 = scmp.eq.s32.totalorder %s14, 1
      %p95 = scmp.ne.s32.totalorder %s90, %s92
      %p96 = scmp.eq.s32.totalorder %s14, 0
      %p97 = por %p95, %p96
      %p98 = scmp.ne.s32.totalorder %s90, %s92
      %p99 = scmp.eq.s32.totalorder %s19, 1
      %p100 = por %p98, %p99
      %p101 = scmp.ne.s32.totalorder %s92, %s93
      %p102 = scmp.eq.s32.totalorder %s19, 0
      %p103 = por %p101, %p102
      %p104 = scmp.ne.s32.totalorder %s92, %s93
      %p105 = scmp.eq.s32.totalorder %s20, 1
      %p106 = por %p104, %p105
      %p108 = scmp.ne.s32.totalorder %s93, %s107
      %p109 = scmp.eq.s32.totalorder %s20, 0
      %p110 = por %p108, %p109
      %s112 = sadd.s32 %s111, 1
      %p115 = scmp.eq.s32.totalorder %s14, 1
      %p116 = scmp.ne.s32.totalorder %s111, %s113
      %p117 = scmp.eq.s32.totalorder %s14, 0
      %p118 = por %p116, %p117
      %p119 = scmp.ne.s32.totalorder %s111, %s113
      %p120 = scmp.eq.s32.totalorder %s19, 1
      %p121 = por %p119, %p120
      %p122 = scmp.ne.s32.totalorder %s113, %s114
      %p123 = scmp.eq.s32.totalorder %s19, 0
      %p124 = por %p122, %p123
      %p125 = scmp.ne.s32.totalorder %s113, %s114
      %p126 = scmp.eq.s32.totalorder %s20, 1
      %p127 = por %p125, %p126
      %p129 = scmp.ne.s32.totalorder %s114, %s128
      %p130 = scmp.eq.s32.totalorder %s20, 0
      %p131 = por %p129, %p130
      %s132 = ssub.s32 %s14, %s21
      %p133 = scmp.eq.s32.totalorder %s132, 0
      %s135 = sadd.s32 %s134, 1
      %s136 = scalar_select %p133, %s134, %s135
      %p139 = pneg %p133
      %p140 = scmp.eq.s32.totalorder %s14, 1
      %p141 = por %p139, %p140
      %p142 = scmp.ne.s32.totalorder %s134, %s137
      %p143 = scmp.eq.s32.totalorder %s14, 0
      %p144 = por %p142, %p143
      %p145 = scmp.ne.s32.totalorder %s134, %s137
      %p146 = scmp.eq.s32.totalorder %s19, 1
      %p147 = por %p145, %p146
      %p148 = scmp.ne.s32.totalorder %s137, %s138
      %p149 = scmp.eq.s32.totalorder %s19, 0
      %p150 = por %p148, %p149
      %p151 = scmp.ne.s32.totalorder %s137, %s138
      %p152 = scmp.eq.s32.totalorder %s20, 1
      %p153 = por %p151, %p152
      %p155 = scmp.ne.s32.totalorder %s138, %s154
      %p156 = scmp.eq.s32.totalorder %s20, 0
      %p157 = por %p155, %p156
      %p158 = scmp.le.s32.totalorder 1, %s14
      %p159 = scmp.lt.s32.totalorder %s14, 3
      %p160 = pnand %p158, %p159
      %p161 = pneg %p160
      // Predicated region
      $region9: #{tpu_custom_call.1} parent=5 // pred_check
        _
      $region10: #{tpu_custom_call.1} parent=5 // pred_check_branch
        %163 = sbr.rel (%p160) target = $region12
      $region11: #{tpu_custom_call.1} parent=5 // pred_region
        %s164 = ssub.s32 %s14, 1
        // Predicated region
        $region13: #{tpu_custom_call.1} parent=11 // pred_check
          %p165 = pneg %p61
        $region14: #{tpu_custom_call.1} parent=11 // pred_check_branch
          %167 = sbr.rel (%p165) target = $region16
        $region15: #{tpu_custom_call.1} parent=11 // pred_region
          _
        $region16: #{tpu_custom_call.1} parent=11 // pred_fallthru
          _
        // Predicated region
        $region17: #{tpu_custom_call.1} parent=11 // pred_check
          %p168 = pneg %p82
        $region18: #{tpu_custom_call.1} parent=11 // pred_check_branch
          %170 = sbr.rel (%p168) target = $region20
        $region19: #{tpu_custom_call.1} parent=11 // pred_region
          _
        $region20: #{tpu_custom_call.1} parent=11 // pred_fallthru
          _
        // Predicated region
        $region21: #{tpu_custom_call.1} parent=11 // pred_check
          %p171 = pneg %p103
        $region22: #{tpu_custom_call.1} parent=11 // pred_check_branch
          %173 = sbr.rel (%p171) target = $region24
        $region23: #{tpu_custom_call.1} parent=11 // pred_region
          _
        $region24: #{tpu_custom_call.1} parent=11 // pred_fallthru
          _
        // Predicated region
        $region25: #{tpu_custom_call.1} parent=11 // pred_check
          %p174 = pneg %p124
        $region26: #{tpu_custom_call.1} parent=11 // pred_check_branch
          %176 = sbr.rel (%p174) target = $region28
        $region27: #{tpu_custom_call.1} parent=11 // pred_region
          _
        $region28: #{tpu_custom_call.1} parent=11 // pred_fallthru
          _
      $region12: #{tpu_custom_call.1} parent=5 // pred_fallthru
        _
      %p177 = scmp.lt.s32.totalorder %s14, 2
      // Predicated region
      $region29: #{tpu_custom_call.1} parent=5 // pred_check
        %p178 = pneg %p177
      $region30: #{tpu_custom_call.1} parent=5 // pred_check_branch
        %180 = sbr.rel (%p178) target = $region32
      $region31: #{tpu_custom_call.1} parent=5 // pred_region
        // Predicated region
        $region33: #{tpu_custom_call.1} parent=31 // pred_check
          %p181 = pneg %p34
        $region34: #{tpu_custom_call.1} parent=31 // pred_check_branch
          %183 = sbr.rel (%p181) target = $region36
        $region35: #{tpu_custom_call.1} parent=31 // pred_region
          %s184 = smul.u32 8, %s14
          %p185 = scmp.lt.s32.totalorder %s184, 15
          %s186 = scalar_select %p185, %s184, 15
          %s187 = smul.addr %s186, 4
          %s188 = smul.addr %s187, 8
          %s189 = scalar_lea.vmem %s0, %s188
          %s190 = smul.u32 8, %s14
        $region36: #{tpu_custom_call.1} parent=31 // pred_fallthru
          _
      $region32: #{tpu_custom_call.1} parent=5 // pred_fallthru
        _
      %p191 = scmp.le.s32.totalorder 1, %s14
      %p192 = scmp.lt.s32.totalorder %s14, 3
      %p193 = pnand %p191, %p192
      %p194 = pneg %p193
      // Predicated region
      $region37: #{tpu_custom_call.1} parent=5 // pred_check
        _
      $region38: #{tpu_custom_call.1} parent=5 // pred_check_branch
        %196 = sbr.rel (%p193) target = $region40
      $region39: #{tpu_custom_call.1} parent=5 // pred_region
        %s197 = ssub.s32 %s14, 1
        %s198 = smul.u32 8, %s19
        %p199 = scmp.lt.s32.totalorder %s198, 15
        %s200 = scalar_select %p199, %s198, 15
        %s201 = smul.addr %s200, 4
        %s202 = smul.addr %s201, 8
        %s203 = scalar_lea.vmem %s0, %s202
        %p204 = pneg %p40
        %p205 = pneg %p37
        %p206 = pneg %p61
        %p207 = pneg %p58
        %p208 = pneg %p82
        %p209 = pneg %p79
        %p210 = pneg %p103
        %p211 = pneg %p100
        %p212 = pneg %p124
        %p213 = pneg %p121
        %p214 = pneg %p150
        %p215 = pneg %p147
        %s216 = sand.u32 %s137, 1
        %s217 = scalar_lea.sflag [#allocation3], %s216
        %s218 = sand.u32 %s137, 1
        %s219 = smul.addr %s218, 16
        %s220 = scalar_lea.vmem [#allocation2], %s219
        %s221 = smul.u32 8, %s19
        %p222 = scmp.lt.s32.totalorder %s221, 15
        %s223 = scalar_select %p222, %s221, 15
        %s224 = smul.addr %s223, 4
        %s225 = smul.addr %s224, 8
        %s226 = scalar_lea.vmem %s0, %s225
        %s227 = smul.u32 8, %s19
        %v229 = vld [vmem:[%s1] sm:$0xf]
        %v230 = vld [vmem:[%s2] sm:$0x1]
        %v231 = vld [vmem:[%s3] sm:$0xff]
        %v232 = vld [vmem:[%s3 + $0x8] sm:$0xff]
        %v233 = vld [vmem:[%s3 + $0x10] sm:$0xff]
        %v234 = vld [vmem:[%s3 + $0x18] sm:$0xff]
        %v235 = vld [vmem:[%s3 + $0x20] sm:$0xff]
        %v236 = vld [vmem:[%s3 + $0x28] sm:$0xff]
        %v237 = vld [vmem:[%s3 + $0x30] sm:$0xff]
        %v238 = vld [vmem:[%s3 + $0x38] sm:$0xff]
        %v239 = vld [vmem:[%s3 + $0x40] sm:$0xff]
        %v240 = vld [vmem:[%s3 + $0x48] sm:$0xff]
        %v241 = vld [vmem:[%s3 + $0x50] sm:$0xff]
        %v242 = vld [vmem:[%s3 + $0x58] sm:$0xff]
        %v243 = vld [vmem:[%s3 + $0x60] sm:$0xff]
        %v244 = vld [vmem:[%s3 + $0x68] sm:$0xff]
        %v245 = vld [vmem:[%s3 + $0x70] sm:$0xff]
        %v246 = vld [vmem:[%s3 + $0x78] sm:$0xff]
        %v247 = vld [vmem:[%s4] sm:$0xf]
        %v248 = vld [vmem:[%s226] sm:$0xff]
        %v249 = vld [vmem:[%s226 + $0x8] sm:$0xff]
        %v250 = vld [vmem:[%s226 + $0x10] sm:$0xff]
        %v251 = vld [vmem:[%s226 + $0x18] sm:$0xff]
        %v252 = vld [vmem:[%s226 + $0x20] sm:$0xff]
        %v253 = vld [vmem:[%s226 + $0x28] sm:$0xff]
        %v254 = vld [vmem:[%s226 + $0x30] sm:$0xff]
        %v255 = vld [vmem:[%s226 + $0x38] sm:$0xff]
        %v256 = vld [vmem:[%s226 + $0x40] sm:$0xff]
        %v257 = vld [vmem:[%s226 + $0x48] sm:$0xff]
        %v258 = vld [vmem:[%s226 + $0x50] sm:$0xff]
        %v259 = vld [vmem:[%s226 + $0x58] sm:$0xff]
        %v260 = vld [vmem:[%s226 + $0x60] sm:$0xff]
        %v261 = vld [vmem:[%s226 + $0x68] sm:$0xff]
        %v262 = vld [vmem:[%s226 + $0x70] sm:$0xff]
        %v263 = vld [vmem:[%s226 + $0x78] sm:$0xff]
        %v264 = vld [vmem:[%s226 + $0x80] sm:$0xff]
        %v265 = vld [vmem:[%s226 + $0x88] sm:$0xff]
        %v266 = vld [vmem:[%s226 + $0x90] sm:$0xff]
        %v267 = vld [vmem:[%s226 + $0x98] sm:$0xff]
        %v268 = vld [vmem:[%s226 + $0xa0] sm:$0xff]
        %v269 = vld [vmem:[%s226 + $0xa8] sm:$0xff]
        %v270 = vld [vmem:[%s226 + $0xb0] sm:$0xff]
        %v271 = vld [vmem:[%s226 + $0xb8] sm:$0xff]
        %v272 = vld [vmem:[%s226 + $0xc0] sm:$0xff]
        %v273 = vld [vmem:[%s226 + $0xc8] sm:$0xff]
        %v274 = vld [vmem:[%s226 + $0xd0] sm:$0xff]
        %v275 = vld [vmem:[%s226 + $0xd8] sm:$0xff]
        %v276 = vld [vmem:[%s226 + $0xe0] sm:$0xff]
        %v277 = vld [vmem:[%s226 + $0xe8] sm:$0xff]
        %v278 = vld [vmem:[%s226 + $0xf0] sm:$0xff]
        %v279 = vld [vmem:[%s226 + $0xf8] sm:$0xff]
        %v280 = vpack.c.bf16 %v249, %v248
        %v281 = vpack.c.bf16 %v251, %v250
        %v282 = vpack.c.bf16 %v253, %v252
        %v283 = vpack.c.bf16 %v255, %v254
        %v284 = vpack.c.bf16 %v257, %v256
        %v285 = vpack.c.bf16 %v259, %v258
        %v286 = vpack.c.bf16 %v261, %v260
        %v287 = vpack.c.bf16 %v263, %v262
        %v288 = vpack.c.bf16 %v265, %v264
        %v289 = vpack.c.bf16 %v267, %v266
        %v290 = vpack.c.bf16 %v269, %v268
        %v291 = vpack.c.bf16 %v271, %v270
        %v292 = vpack.c.bf16 %v273, %v272
        %v293 = vpack.c.bf16 %v275, %v274
        %v294 = vpack.c.bf16 %v277, %v276
        %v295 = vpack.c.bf16 %v279, %v278
        %v297 = vlaneseq
        %v298 = vshrl.u32 %v297, 7
        %v299 = vsub.s32 0, %v298
        %v300 = vrot.slane %v230, %v299
        %vm302 = vcmask 64512
        %v304 = vsel %vm302, %v280, 0
        %v307 = vsel %vm302, %v281, 0
        %v310 = vsel %vm302, %v282, 0
        %v313 = vsel %vm302, %v283, 0
        %v316 = vsel %vm302, %v284, 0
        %v319 = vsel %vm302, %v285, 0
        %v322 = vsel %vm302, %v286, 0
        %v325 = vsel %vm302, %v287, 0
        %v328 = vsel %vm302, %v288, 0
        %v331 = vsel %vm302, %v289, 0
        %v334 = vsel %vm302, %v290, 0
        %v337 = vsel %vm302, %v291, 0
        %v340 = vsel %vm302, %v292, 0
        %v343 = vsel %vm302, %v293, 0
        %v346 = vsel %vm302, %v294, 0
        %v349 = vsel %vm302, %v295, 0
        %vm351 = vcmask 1043456
        %v353 = vsel %vm351, %v229, 0
        %355 = vmatprep.subr.bf16.mxu0 0
        %356 = vmatpush1.bf16.msra.mxu0 %v353
        %357 = vmatprep.subr.bf16.mxu0 0
        %358 = vmatpush1.bf16.msra.mxu0 0
        %359 = vmatprep.subr.bf16.mxu0 0
        %360 = vmatpush1.bf16.msra.mxu0 0
        %361 = vmatprep.subr.bf16.mxu0 0
        %362 = vmatpush1.bf16.msra.mxu0 0
        %363 = vmatprep.subr.bf16.mxu0 0
        %364 = vmatpush1.bf16.msra.mxu0 0
        %365 = vmatprep.subr.bf16.mxu0 0
        %366 = vmatpush1.bf16.msra.mxu0 0
        %367 = vmatprep.subr.bf16.mxu0 0
        %368 = vmatpush1.bf16.msra.mxu0 0
        %369 = vmatprep.subr.bf16.mxu0 0
        %370 = vmatpush1.bf16.msra.mxu0 0
        %371 = vmatprep.subr.bf16.mxu0 0
        %372 = vmatpush1.bf16.msra.mxu0 0
        %373 = vmatprep.subr.bf16.mxu0 0
        %374 = vmatpush1.bf16.msra.mxu0 0
        %375 = vmatprep.subr.bf16.mxu0 0
        %376 = vmatpush1.bf16.msra.mxu0 0
        %377 = vmatprep.subr.bf16.mxu0 0
        %378 = vmatpush1.bf16.msra.mxu0 0
        %379 = vmatprep.subr.bf16.mxu0 0
        %380 = vmatpush1.bf16.msra.mxu0 0
        %381 = vmatprep.subr.bf16.mxu0 0
        %382 = vmatpush1.bf16.msra.mxu0 0
        %383 = vmatprep.subr.bf16.mxu0 0
        %384 = vmatpush1.bf16.msra.mxu0 0
        %385 = vmatprep.subr.bf16.mxu0 0
        %386 = vmatpush1.bf16.msra.mxu0 0
        %387 = vmatprep.mubr.bf16.mxu0 0
        %388 = vmatmul.mubr.bf16.gmra.mrb[0].mxu0 %v304
        %v389 = vpop.f32.mrb[0].mxu0
        %v390 = vadd.f32 %v300, %v389
        %v391 = vpop.f32.mrb[0].mxu0
        %v392 = vpop.f32.mrb[0].mxu0
        %v393 = vadd.f32 %v300, %v392
        %v394 = vpop.f32.mrb[0].mxu0
        %395 = vmatprep.mubr.bf16.mxu0 0
        %396 = vmatmul.mubr.bf16.gmra.mrb[0].mxu0 %v307
        %v397 = vpop.f32.mrb[0].mxu0
        %v398 = vadd.f32 %v300, %v397
        %v399 = vpop.f32.mrb[0].mxu0
        %v400 = vpop.f32.mrb[0].mxu0
        %v401 = vadd.f32 %v300, %v400
        %v402 = vpop.f32.mrb[0].mxu0
        %403 = vmatprep.mubr.bf16.mxu0 0
        %404 = vmatmul.mubr.bf16.gmra.mrb[0].mxu0 %v310
        %v405 = vpop.f32.mrb[0].mxu0
        %v406 = vadd.f32 %v300, %v405
        %v407 = vpop.f32.mrb[0].mxu0
        %v408 = vpop.f32.mrb[0].mxu0
        %v409 = vadd.f32 %v300, %v408
        %v410 = vpop.f32.mrb[0].mxu0
        %411 = vmatprep.mubr.bf16.mxu0 0
        %412 = vmatmul.mubr.bf16.gmra.mrb[0].mxu0 %v313
        %v413 = vpop.f32.mrb[0].mxu0
        %v414 = vadd.f32 %v300, %v413
        %v415 = vpop.f32.mrb[0].mxu0
        %v416 = vpop.f32.mrb[0].mxu0
        %v417 = vadd.f32 %v300, %v416
        %v418 = vpop.f32.mrb[0].mxu0
        %419 = vmatprep.mubr.bf16.mxu0 0
        %420 = vmatmul.mubr.bf16.gmra.mrb[0].mxu0 %v316
        %v421 = vpop.f32.mrb[0].mxu0
        %v422 = vadd.f32 %v300, %v421
        %v423 = vpop.f32.mrb[0].mxu0
        %v424 = vpop.f32.mrb[0].mxu0
        %v425 = vadd.f32 %v300, %v424
        %v426 = vpop.f32.mrb[0].mxu0
        %427 = vmatprep.mubr.bf16.mxu0 0
        %428 = vmatmul.mubr.bf16.gmra.mrb[0].mxu0 %v319
        %v429 = vpop.f32.mrb[0].mxu0
        %v430 = vadd.f32 %v300, %v429
        %v431 = vpop.f32.mrb[0].mxu0
        %v432 = vpop.f32.mrb[0].mxu0
        %v433 = vadd.f32 %v300, %v432
        %v434 = vpop.f32.mrb[0].mxu0
        %435 = vmatprep.mubr.bf16.mxu0 0
        %436 = vmatmul.mubr.bf16.gmra.mrb[0].mxu0 %v322
        %v437 = vpop.f32.mrb[0].mxu0
        %v438 = vadd.f32 %v300, %v437
        %v439 = vpop.f32.mrb[0].mxu0
        %v440 = vpop.f32.mrb[0].mxu0
        %v441 = vadd.f32 %v300, %v440
        %v442 = vpop.f32.mrb[0].mxu0
        %443 = vmatprep.mubr.bf16.mxu0 0
        %444 = vmatmul.mubr.bf16.gmra.mrb[0].mxu0 %v325
        %v445 = vpop.f32.mrb[0].mxu0
        %v446 = vadd.f32 %v300, %v445
        %v447 = vpop.f32.mrb[0].mxu0
        %v448 = vpop.f32.mrb[0].mxu0
        %v449 = vadd.f32 %v300, %v448
        %v450 = vpop.f32.mrb[0].mxu0
        %451 = vmatprep.mubr.bf16.mxu0 0
        %452 = vmatmul.mubr.bf16.gmra.mrb[0].mxu0 %v328
        %v453 = vpop.f32.mrb[0].mxu0
        %v454 = vadd.f32 %v300, %v453
        %v455 = vpop.f32.mrb[0].mxu0
        %v456 = vpop.f32.mrb[0].mxu0
        %v457 = vadd.f32 %v300, %v456
        %v458 = vpop.f32.mrb[0].mxu0
        %459 = vmatprep.mubr.bf16.mxu0 0
        %460 = vmatmul.mubr.bf16.gmra.mrb[0].mxu0 %v331
        %v461 = vpop.f32.mrb[0].mxu0
        %v462 = vadd.f32 %v300, %v461
        %v463 = vpop.f32.mrb[0].mxu0
        %v464 = vpop.f32.mrb[0].mxu0
        %v465 = vadd.f32 %v300, %v464
        %v466 = vpop.f32.mrb[0].mxu0
        %467 = vmatprep.mubr.bf16.mxu0 0
        %468 = vmatmul.mubr.bf16.gmra.mrb[0].mxu0 %v334
        %v469 = vpop.f32.mrb[0].mxu0
        %v470 = vadd.f32 %v300, %v469
        %v471 = vpop.f32.mrb[0].mxu0
        %v472 = vpop.f32.mrb[0].mxu0
        %v473 = vadd.f32 %v300, %v472
        %v474 = vpop.f32.mrb[0].mxu0
        %475 = vmatprep.mubr.bf16.mxu0 0
        %476 = vmatmul.mubr.bf16.gmra.mrb[0].mxu0 %v337
        %v477 = vpop.f32.mrb[0].mxu0
        %v478 = vadd.f32 %v300, %v477
        %v479 = vpop.f32.mrb[0].mxu0
        %v480 = vpop.f32.mrb[0].mxu0
        %v481 = vadd.f32 %v300, %v480
        %v482 = vpop.f32.mrb[0].mxu0
        %483 = vmatprep.mubr.bf16.mxu0 0
        %484 = vmatmul.mubr.bf16.gmra.mrb[0].mxu0 %v340
        %v485 = vpop.f32.mrb[0].mxu0
        %v486 = vadd.f32 %v300, %v485
        %v487 = vpop.f32.mrb[0].mxu0
        %v488 = vpop.f32.mrb[0].mxu0
        %v489 = vadd.f32 %v300, %v488
        %v490 = vpop.f32.mrb[0].mxu0
        %491 = vmatprep.mubr.bf16.mxu0 0
        %492 = vmatmul.mubr.bf16.gmra.mrb[0].mxu0 %v343
        %v493 = vpop.f32.mrb[0].mxu0
        %v494 = vadd.f32 %v300, %v493
        %v495 = vpop.f32.mrb[0].mxu0
        %v496 = vpop.f32.mrb[0].mxu0
        %v497 = vadd.f32 %v300, %v496
        %v498 = vpop.f32.mrb[0].mxu0
        %499 = vmatprep.mubr.bf16.mxu0 0
        %500 = vmatmul.mubr.bf16.gmra.mrb[0].mxu0 %v346
        %v501 = vpop.f32.mrb[0].mxu0
        %v502 = vadd.f32 %v300, %v501
        %v503 = vpop.f32.mrb[0].mxu0
        %v504 = vpop.f32.mrb[0].mxu0
        %v505 = vadd.f32 %v300, %v504
        %v506 = vpop.f32.mrb[0].mxu0
        %507 = vmatprep.mubr.bf16.mxu0 0
        %508 = vmatmul.mubr.bf16.gmra.mrb[0].mxu0 %v349
        %v509 = vpop.f32.mrb[0].mxu0
        %v510 = vadd.f32 %v300, %v509
        %v511 = vpop.f32.mrb[0].mxu0
        %v512 = vpop.f32.mrb[0].mxu0
        %v513 = vadd.f32 %v300, %v512
        %v514 = vpop.f32.mrb[0].mxu0
        %515 = vdwg.mxu0
        %v516 = vmax.f32 %v390, 0.0
        %v517 = vmax.f32 %v393, 0.0
        %v518 = vmax.f32 %v398, 0.0
        %v519 = vmax.f32 %v401, 0.0
        %v520 = vmax.f32 %v406, 0.0
        %v521 = vmax.f32 %v409, 0.0
        %v522 = vmax.f32 %v414, 0.0
        %v523 = vmax.f32 %v417, 0.0
        %v524 = vmax.f32 %v422, 0.0
        %v525 = vmax.f32 %v425, 0.0
        %v526 = vmax.f32 %v430, 0.0
        %v527 = vmax.f32 %v433, 0.0
        %v528 = vmax.f32 %v438, 0.0
        %v529 = vmax.f32 %v441, 0.0
        %v530 = vmax.f32 %v446, 0.0
        %v531 = vmax.f32 %v449, 0.0
        %v532 = vmax.f32 %v454, 0.0
        %v533 = vmax.f32 %v457, 0.0
        %v534 = vmax.f32 %v462, 0.0
        %v535 = vmax.f32 %v465, 0.0
        %v536 = vmax.f32 %v470, 0.0
        %v537 = vmax.f32 %v473, 0.0
        %v538 = vmax.f32 %v478, 0.0
        %v539 = vmax.f32 %v481, 0.0
        %v540 = vmax.f32 %v486, 0.0
        %v541 = vmax.f32 %v489, 0.0
        %v542 = vmax.f32 %v494, 0.0
        %v543 = vmax.f32 %v497, 0.0
        %v544 = vmax.f32 %v502, 0.0
        %v545 = vmax.f32 %v505, 0.0
        %v546 = vmax.f32 %v510, 0.0
        %v547 = vmax.f32 %v513, 0.0
        %v548 = vpack.c.bf16 %v517, %v516
        %v549 = vpack.c.bf16 %v519, %v518
        %v550 = vpack.c.bf16 %v521, %v520
        %v551 = vpack.c.bf16 %v523, %v522
        %v552 = vpack.c.bf16 %v525, %v524
        %v553 = vpack.c.bf16 %v527, %v526
        %v554 = vpack.c.bf16 %v529, %v528
        %v555 = vpack.c.bf16 %v531, %v530
        %v556 = vpack.c.bf16 %v533, %v532
        %v557 = vpack.c.bf16 %v535, %v534
        %v558 = vpack.c.bf16 %v537, %v536
        %v559 = vpack.c.bf16 %v539, %v538
        %v560 = vpack.c.bf16 %v541, %v540
        %v561 = vpack.c.bf16 %v543, %v542
        %v562 = vpack.c.bf16 %v545, %v544
        %v563 = vpack.c.bf16 %v547, %v546
        %v565 = vlaneseq
        %v566 = vshrl.u32 %v565, 7
        %v567 = vsub.s32 0, %v566
        %v568 = vrot.slane %v247, %v567
        %v569 = vlaneseq
        %v570 = vshrl.u32 %v569, 7
        %v571 = vsub.s32 1, %v570
        %v572 = vrot.slane %v247, %v571
        %v573 = vlaneseq
        %v574 = vshrl.u32 %v573, 7
        %v575 = vsub.s32 2, %v574
        %v576 = vrot.slane %v247, %v575
        %v577 = vlaneseq
        %v578 = vshrl.u32 %v577, 7
        %v579 = vsub.s32 3, %v578
        %v580 = vrot.slane %v247, %v579
        %v601 = vunpack.c.l.b16 %v231
        %v602 = vunpack.c.h.b16 %v231
        %v603 = vunpack.c.l.b16 %v232
        %v604 = vunpack.c.h.b16 %v232
        %v605 = vunpack.c.l.b16 %v233
        %v606 = vunpack.c.h.b16 %v233
        %v607 = vunpack.c.l.b16 %v234
        %v608 = vunpack.c.h.b16 %v234
        %v609 = vunpack.c.l.b16 %v235
        %v610 = vunpack.c.h.b16 %v235
        %v611 = vunpack.c.l.b16 %v236
        %v612 = vunpack.c.h.b16 %v236
        %v613 = vunpack.c.l.b16 %v237
        %v614 = vunpack.c.h.b16 %v237
        %v615 = vunpack.c.l.b16 %v238
        %v616 = vunpack.c.h.b16 %v238
        %v617 = vunpack.c.l.b16 %v239
        %v618 = vunpack.c.h.b16 %v239
        %v619 = vunpack.c.l.b16 %v240
        %v620 = vunpack.c.h.b16 %v240
        %v621 = vunpack.c.l.b16 %v241
        %v622 = vunpack.c.h.b16 %v241
        %v623 = vunpack.c.l.b16 %v242
        %v624 = vunpack.c.h.b16 %v242
        %v625 = vunpack.c.l.b16 %v243
        %v626 = vunpack.c.h.b16 %v243
        %v627 = vunpack.c.l.b16 %v244
        %v628 = vunpack.c.h.b16 %v244
        %v629 = vunpack.c.l.b16 %v245
        %v630 = vunpack.c.h.b16 %v245
        %v631 = vunpack.c.l.b16 %v246
        %v632 = vunpack.c.h.b16 %v246
        %v633 = vpack.c.b16 %v605, %v601
        %v634 = vpack.c.b16 %v606, %v602
        %v635 = vpack.c.b16 %v607, %v603
        %v636 = vpack.c.b16 %v608, %v604
        %v637 = vpack.c.b16 %v613, %v609
        %v638 = vpack.c.b16 %v614, %v610
        %v639 = vpack.c.b16 %v615, %v611
        %v640 = vpack.c.b16 %v616, %v612
        %v641 = vpack.c.b16 %v621, %v617
        %v642 = vpack.c.b16 %v622, %v618
        %v643 = vpack.c.b16 %v623, %v619
        %v644 = vpack.c.b16 %v624, %v620
        %v645 = vpack.c.b16 %v629, %v625
        %v646 = vpack.c.b16 %v630, %v626
        %v647 = vpack.c.b16 %v631, %v627
        %v648 = vpack.c.b16 %v632, %v628
        %vm665 = vcmask 523264
        %v667 = vsel %vm665, %v548, 0
        %v670 = vsel %vm665, %v549, 0
        %v673 = vsel %vm665, %v550, 0
        %v676 = vsel %vm665, %v551, 0
        %v679 = vsel %vm665, %v552, 0
        %v682 = vsel %vm665, %v553, 0
        %v685 = vsel %vm665, %v554, 0
        %v688 = vsel %vm665, %v555, 0
        %v691 = vsel %vm665, %v556, 0
        %v694 = vsel %vm665, %v557, 0
        %v697 = vsel %vm665, %v558, 0
        %v700 = vsel %vm665, %v559, 0
        %v703 = vsel %vm665, %v560, 0
        %v706 = vsel %vm665, %v561, 0
        %v709 = vsel %vm665, %v562, 0
        %v712 = vsel %vm665, %v563, 0
        %714 = vmatprep.subr.bf16.mxu0 %v634
        %715 = vmatpush1.bf16.msra.mxu0 %v633
        %716 = vmatprep.subr.bf16.mxu0 %v638
        %717 = vmatpush1.bf16.msra.mxu0 %v637
        %718 = vmatprep.subr.bf16.mxu0 %v642
        %719 = vmatpush1.bf16.msra.mxu0 %v641
        %720 = vmatprep.subr.bf16.mxu0 %v646
        %721 = vmatpush1.bf16.msra.mxu0 %v645
        %722 = vmatprep.subr.bf16.mxu0 0
        %723 = vmatpush1.bf16.msra.mxu0 0
        %724 = vmatprep.subr.bf16.mxu0 0
        %725 = vmatpush1.bf16.msra.mxu0 0
        %726 = vmatprep.subr.bf16.mxu0 0
        %727 = vmatpush1.bf16.msra.mxu0 0
        %728 = vmatprep.subr.bf16.mxu0 0
        %729 = vmatpush1.bf16.msra.mxu0 0
        %730 = vmatprep.subr.bf16.mxu0 0
        %731 = vmatpush1.bf16.msra.mxu0 0
        %732 = vmatprep.subr.bf16.mxu0 0
        %733 = vmatpush1.bf16.msra.mxu0 0
        %734 = vmatprep.subr.bf16.mxu0 0
        %735 = vmatpush1.bf16.msra.mxu0 0
        %736 = vmatprep.subr.bf16.mxu0 0
        %737 = vmatpush1.bf16.msra.mxu0 0
        %738 = vmatprep.subr.bf16.mxu0 0
        %739 = vmatpush1.bf16.msra.mxu0 0
        %740 = vmatprep.subr.bf16.mxu0 0
        %741 = vmatpush1.bf16.msra.mxu0 0
        %742 = vmatprep.subr.bf16.mxu0 0
        %743 = vmatpush1.bf16.msra.mxu0 0
        %744 = vmatprep.subr.bf16.mxu0 0
        %745 = vmatpush1.bf16.msra.mxu0 0
        %746 = vmatprep.mubr.bf16.mxu0 0
        %747 = vmatmul.mubr.bf16.gmra.mrb[0].mxu0 %v667
        %v748 = vpop.f32.mrb[0].mxu0
        %v749 = vadd.f32 %v568, %v748
        %v750 = vpop.f32.mrb[0].mxu0
        %v751 = vadd.f32 %v572, %v750
        %v752 = vpop.f32.mrb[0].mxu0
        %v753 = vadd.f32 %v568, %v752
        %v754 = vpop.f32.mrb[0].mxu0
        %v755 = vadd.f32 %v572, %v754
        %756 = vmatprep.mubr.bf16.mxu0 0
        %757 = vmatmul.mubr.bf16.gmra.mrb[0].mxu0 %v670
        %v758 = vpop.f32.mrb[0].mxu0
        %v759 = vadd.f32 %v568, %v758
        %v760 = vpop.f32.mrb[0].mxu0
        %v761 = vadd.f32 %v572, %v760
        %v762 = vpop.f32.mrb[0].mxu0
        %v763 = vadd.f32 %v568, %v762
        %v764 = vpop.f32.mrb[0].mxu0
        %v765 = vadd.f32 %v572, %v764
        %766 = vmatprep.mubr.bf16.mxu0 0
        %767 = vmatmul.mubr.bf16.gmra.mrb[0].mxu0 %v673
        %v768 = vpop.f32.mrb[0].mxu0
        %v769 = vadd.f32 %v568, %v768
        %v770 = vpop.f32.mrb[0].mxu0
        %v771 = vadd.f32 %v572, %v770
        %v772 = vpop.f32.mrb[0].mxu0
        %v773 = vadd.f32 %v568, %v772
        %v774 = vpop.f32.mrb[0].mxu0
        %v775 = vadd.f32 %v572, %v774
        %776 = vmatprep.mubr.bf16.mxu0 0
        %777 = vmatmul.mubr.bf16.gmra.mrb[0].mxu0 %v676
        %v778 = vpop.f32.mrb[0].mxu0
        %v779 = vadd.f32 %v568, %v778
        %v780 = vpop.f32.mrb[0].mxu0
        %v781 = vadd.f32 %v572, %v780
        %v782 = vpop.f32.mrb[0].mxu0
        %v783 = vadd.f32 %v568, %v782
        %v784 = vpop.f32.mrb[0].mxu0
        %v785 = vadd.f32 %v572, %v784
        %786 = vmatprep.mubr.bf16.mxu0 0
        %787 = vmatmul.mubr.bf16.gmra.mrb[0].mxu0 %v679
        %v788 = vpop.f32.mrb[0].mxu0
        %v789 = vadd.f32 %v568, %v788
        %v790 = vpop.f32.mrb[0].mxu0
        %v791 = vadd.f32 %v572, %v790
        %v792 = vpop.f32.mrb[0].mxu0
        %v793 = vadd.f32 %v568, %v792
        %v794 = vpop.f32.mrb[0].mxu0
        %v795 = vadd.f32 %v572, %v794
        %796 = vmatprep.mubr.bf16.mxu0 0
        %797 = vmatmul.mubr.bf16.gmra.mrb[0].mxu0 %v682
        %v798 = vpop.f32.mrb[0].mxu0
        %v799 = vadd.f32 %v568, %v798
        %v800 = vpop.f32.mrb[0].mxu0
        %v801 = vadd.f32 %v572, %v800
        %v802 = vpop.f32.mrb[0].mxu0
        %v803 = vadd.f32 %v568, %v802
        %v804 = vpop.f32.mrb[0].mxu0
        %v805 = vadd.f32 %v572, %v804
        %806 = vmatprep.mubr.bf16.mxu0 0
        %807 = vmatmul.mubr.bf16.gmra.mrb[0].mxu0 %v685
        %v808 = vpop.f32.mrb[0].mxu0
        %v809 = vadd.f32 %v568, %v808
        %v810 = vpop.f32.mrb[0].mxu0
        %v811 = vadd.f32 %v572, %v810
        %v812 = vpop.f32.mrb[0].mxu0
        %v813 = vadd.f32 %v568, %v812
        %v814 = vpop.f32.mrb[0].mxu0
        %v815 = vadd.f32 %v572, %v814
        %816 = vmatprep.mubr.bf16.mxu0 0
        %817 = vmatmul.mubr.bf16.gmra.mrb[0].mxu0 %v688
        %v818 = vpop.f32.mrb[0].mxu0
        %v819 = vadd.f32 %v568, %v818
        %v820 = vpop.f32.mrb[0].mxu0
        %v821 = vadd.f32 %v572, %v820
        %v822 = vpop.f32.mrb[0].mxu0
        %v823 = vadd.f32 %v568, %v822
        %v824 = vpop.f32.mrb[0].mxu0
        %v825 = vadd.f32 %v572, %v824
        %826 = vmatprep.mubr.bf16.mxu0 0
        %827 = vmatmul.mubr.bf16.gmra.mrb[0].mxu0 %v691
        %v828 = vpop.f32.mrb[0].mxu0
        %v829 = vadd.f32 %v568, %v828
        %v830 = vpop.f32.mrb[0].mxu0
        %v831 = vadd.f32 %v572, %v830
        %v832 = vpop.f32.mrb[0].mxu0
        %v833 = vadd.f32 %v568, %v832
        %v834 = vpop.f32.mrb[0].mxu0
        %v835 = vadd.f32 %v572, %v834
        %836 = vmatprep.mubr.bf16.mxu0 0
        %837 = vmatmul.mubr.bf16.gmra.mrb[0].mxu0 %v694
        %v838 = vpop.f32.mrb[0].mxu0
        %v839 = vadd.f32 %v568, %v838
        %v840 = vpop.f32.mrb[0].mxu0
        %v841 = vadd.f32 %v572, %v840
        %v842 = vpop.f32.mrb[0].mxu0
        %v843 = vadd.f32 %v568, %v842
        %v844 = vpop.f32.mrb[0].mxu0
        %v845 = vadd.f32 %v572, %v844
        %846 = vmatprep.mubr.bf16.mxu0 0
        %847 = vmatmul.mubr.bf16.gmra.mrb[0].mxu0 %v697
        %v848 = vpop.f32.mrb[0].mxu0
        %v849 = vadd.f32 %v568, %v848
        %v850 = vpop.f32.mrb[0].mxu0
        %v851 = vadd.f32 %v572, %v850
        %v852 = vpop.f32.mrb[0].mxu0
        %v853 = vadd.f32 %v568, %v852
        %v854 = vpop.f32.mrb[0].mxu0
        %v855 = vadd.f32 %v572, %v854
        %856 = vmatprep.mubr.bf16.mxu0 0
        %857 = vmatmul.mubr.bf16.gmra.mrb[0].mxu0 %v700
        %v858 = vpop.f32.mrb[0].mxu0
        %v859 = vadd.f32 %v568, %v858
        %v860 = vpop.f32.mrb[0].mxu0
        %v861 = vadd.f32 %v572, %v860
        %v862 = vpop.f32.mrb[0].mxu0
        %v863 = vadd.f32 %v568, %v862
        %v864 = vpop.f32.mrb[0].mxu0
        %v865 = vadd.f32 %v572, %v864
        %866 = vmatprep.mubr.bf16.mxu0 0
        %867 = vmatmul.mubr.bf16.gmra.mrb[0].mxu0 %v703
        %v868 = vpop.f32.mrb[0].mxu0
        %v869 = vadd.f32 %v568, %v868
        %v870 = vpop.f32.mrb[0].mxu0
        %v871 = vadd.f32 %v572, %v870
        %v872 = vpop.f32.mrb[0].mxu0
        %v873 = vadd.f32 %v568, %v872
        %v874 = vpop.f32.mrb[0].mxu0
        %v875 = vadd.f32 %v572, %v874
        %876 = vmatprep.mubr.bf16.mxu0 0
        %877 = vmatmul.mubr.bf16.gmra.mrb[0].mxu0 %v706
        %v878 = vpop.f32.mrb[0].mxu0
        %v879 = vadd.f32 %v568, %v878
        %v880 = vpop.f32.mrb[0].mxu0
        %v881 = vadd.f32 %v572, %v880
        %v882 = vpop.f32.mrb[0].mxu0
        %v883 = vadd.f32 %v568, %v882
        %v884 = vpop.f32.mrb[0].mxu0
        %v885 = vadd.f32 %v572, %v884
        %886 = vmatprep.mubr.bf16.mxu0 0
        %887 = vmatmul.mubr.bf16.gmra.mrb[0].mxu0 %v709
        %v888 = vpop.f32.mrb[0].mxu0
        %v889 = vadd.f32 %v568, %v888
        %v890 = vpop.f32.mrb[0].mxu0
        %v891 = vadd.f32 %v572, %v890
        %v892 = vpop.f32.mrb[0].mxu0
        %v893 = vadd.f32 %v568, %v892
        %v894 = vpop.f32.mrb[0].mxu0
        %v895 = vadd.f32 %v572, %v894
        %896 = vmatprep.mubr.bf16.mxu0 0
        %897 = vmatmul.mubr.bf16.gmra.mrb[0].mxu0 %v712
        %v898 = vpop.f32.mrb[0].mxu0
        %v899 = vadd.f32 %v568, %v898
        %v900 = vpop.f32.mrb[0].mxu0
        %v901 = vadd.f32 %v572, %v900
        %v902 = vpop.f32.mrb[0].mxu0
        %v903 = vadd.f32 %v568, %v902
        %v904 = vpop.f32.mrb[0].mxu0
        %v905 = vadd.f32 %v572, %v904
        %906 = vdwg.mxu0
        %907 = vmatprep.subr.bf16.mxu0 %v636
        %908 = vmatpush1.bf16.msra.mxu0 %v635
        %909 = vmatprep.subr.bf16.mxu0 %v640
        %910 = vmatpush1.bf16.msra.mxu0 %v639
        %911 = vmatprep.subr.bf16.mxu0 %v644
        %912 = vmatpush1.bf16.msra.mxu0 %v643
        %913 = vmatprep.subr.bf16.mxu0 %v648
        %914 = vmatpush1.bf16.msra.mxu0 %v647
        %915 = vmatprep.subr.bf16.mxu0 0
        %916 = vmatpush1.bf16.msra.mxu0 0
        %917 = vmatprep.subr.bf16.mxu0 0
        %918 = vmatpush1.bf16.msra.mxu0 0
        %919 = vmatprep.subr.bf16.mxu0 0
        %920 = vmatpush1.bf16.msra.mxu0 0
        %921 = vmatprep.subr.bf16.mxu0 0
        %922 = vmatpush1.bf16.msra.mxu0 0
        %923 = vmatprep.subr.bf16.mxu0 0
        %924 = vmatpush1.bf16.msra.mxu0 0
        %925 = vmatprep.subr.bf16.mxu0 0
        %926 = vmatpush1.bf16.msra.mxu0 0
        %927 = vmatprep.subr.bf16.mxu0 0
        %928 = vmatpush1.bf16.msra.mxu0 0
        %929 = vmatprep.subr.bf16.mxu0 0
        %930 = vmatpush1.bf16.msra.mxu0 0
        %931 = vmatprep.subr.bf16.mxu0 0
        %932 = vmatpush1.bf16.msra.mxu0 0
        %933 = vmatprep.subr.bf16.mxu0 0
        %934 = vmatpush1.bf16.msra.mxu0 0
        %935 = vmatprep.subr.bf16.mxu0 0
        %936 = vmatpush1.bf16.msra.mxu0 0
        %937 = vmatprep.subr.bf16.mxu0 0
        %938 = vmatpush1.bf16.msra.mxu0 0
        %939 = vmatprep.mubr.bf16.mxu0 0
        %940 = vmatmul.mubr.bf16.gmra.mrb[0].mxu0 %v667
        %v941 = vpop.f32.mrb[0].mxu0
        %v942 = vadd.f32 %v576, %v941
        %v943 = vpop.f32.mrb[0].mxu0
        %v944 = vadd.f32 %v580, %v943
        %v945 = vpop.f32.mrb[0].mxu0
        %v946 = vadd.f32 %v576, %v945
        %v947 = vpop.f32.mrb[0].mxu0
        %v948 = vadd.f32 %v580, %v947
        %949 = vmatprep.mubr.bf16.mxu0 0
        %950 = vmatmul.mubr.bf16.gmra.mrb[0].mxu0 %v670
        %v951 = vpop.f32.mrb[0].mxu0
        %v952 = vadd.f32 %v576, %v951
        %v953 = vpop.f32.mrb[0].mxu0
        %v954 = vadd.f32 %v580, %v953
        %v955 = vpop.f32.mrb[0].mxu0
        %v956 = vadd.f32 %v576, %v955
        %v957 = vpop.f32.mrb[0].mxu0
        %v958 = vadd.f32 %v580, %v957
        %959 = vmatprep.mubr.bf16.mxu0 0
        %960 = vmatmul.mubr.bf16.gmra.mrb[0].mxu0 %v673
        %v961 = vpop.f32.mrb[0].mxu0
        %v962 = vadd.f32 %v576, %v961
        %v963 = vpop.f32.mrb[0].mxu0
        %v964 = vadd.f32 %v580, %v963
        %v965 = vpop.f32.mrb[0].mxu0
        %v966 = vadd.f32 %v576, %v965
        %v967 = vpop.f32.mrb[0].mxu0
        %v968 = vadd.f32 %v580, %v967
        %969 = vmatprep.mubr.bf16.mxu0 0
        %970 = vmatmul.mubr.bf16.gmra.mrb[0].mxu0 %v676
        %v971 = vpop.f32.mrb[0].mxu0
        %v972 = vadd.f32 %v576, %v971
        %v973 = vpop.f32.mrb[0].mxu0
        %v974 = vadd.f32 %v580, %v973
        %v975 = vpop.f32.mrb[0].mxu0
        %v976 = vadd.f32 %v576, %v975
        %v977 = vpop.f32.mrb[0].mxu0
        %v978 = vadd.f32 %v580, %v977
        %979 = vmatprep.mubr.bf16.mxu0 0
        %980 = vmatmul.mubr.bf16.gmra.mrb[0].mxu0 %v679
        %v981 = vpop.f32.mrb[0].mxu0
        %v982 = vadd.f32 %v576, %v981
        %v983 = vpop.f32.mrb[0].mxu0
        %v984 = vadd.f32 %v580, %v983
        %v985 = vpop.f32.mrb[0].mxu0
        %v986 = vadd.f32 %v576, %v985
        %v987 = vpop.f32.mrb[0].mxu0
        %v988 = vadd.f32 %v580, %v987
        %989 = vmatprep.mubr.bf16.mxu0 0
        %990 = vmatmul.mubr.bf16.gmra.mrb[0].mxu0 %v682
        %v991 = vpop.f32.mrb[0].mxu0
        %v992 = vadd.f32 %v576, %v991
        %v993 = vpop.f32.mrb[0].mxu0
        %v994 = vadd.f32 %v580, %v993
        %v995 = vpop.f32.mrb[0].mxu0
        %v996 = vadd.f32 %v576, %v995
        %v997 = vpop.f32.mrb[0].mxu0
        %v998 = vadd.f32 %v580, %v997
        %999 = vmatprep.mubr.bf16.mxu0 0
        %1000 = vmatmul.mubr.bf16.gmra.mrb[0].mxu0 %v685
        %v1001 = vpop.f32.mrb[0].mxu0
        %v1002 = vadd.f32 %v576, %v1001
        %v1003 = vpop.f32.mrb[0].mxu0
        %v1004 = vadd.f32 %v580, %v1003
        %v1005 = vpop.f32.mrb[0].mxu0
        %v1006 = vadd.f32 %v576, %v1005
        %v1007 = vpop.f32.mrb[0].mxu0
        %v1008 = vadd.f32 %v580, %v1007
        %1009 = vmatprep.mubr.bf16.mxu0 0
        %1010 = vmatmul.mubr.bf16.gmra.mrb[0].mxu0 %v688
        %v1011 = vpop.f32.mrb[0].mxu0
        %v1012 = vadd.f32 %v576, %v1011
        %v1013 = vpop.f32.mrb[0].mxu0
        %v1014 = vadd.f32 %v580, %v1013
        %v1015 = vpop.f32.mrb[0].mxu0
        %v1016 = vadd.f32 %v576, %v1015
        %v1017 = vpop.f32.mrb[0].mxu0
        %v1018 = vadd.f32 %v580, %v1017
        %1019 = vmatprep.mubr.bf16.mxu0 0
        %1020 = vmatmul.mubr.bf16.gmra.mrb[0].mxu0 %v691
        %v1021 = vpop.f32.mrb[0].mxu0
        %v1022 = vadd.f32 %v576, %v1021
        %v1023 = vpop.f32.mrb[0].mxu0
        %v1024 = vadd.f32 %v580, %v1023
        %v1025 = vpop.f32.mrb[0].mxu0
        %v1026 = vadd.f32 %v576, %v1025
        %v1027 = vpop.f32.mrb[0].mxu0
        %v1028 = vadd.f32 %v580, %v1027
        %1029 = vmatprep.mubr.bf16.mxu0 0
        %1030 = vmatmul.mubr.bf16.gmra.mrb[0].mxu0 %v694
        %v1031 = vpop.f32.mrb[0].mxu0
        %v1032 = vadd.f32 %v576, %v1031
        %v1033 = vpop.f32.mrb[0].mxu0
        %v1034 = vadd.f32 %v580, %v1033
        %v1035 = vpop.f32.mrb[0].mxu0
        %v1036 = vadd.f32 %v576, %v1035
        %v1037 = vpop.f32.mrb[0].mxu0
        %v1038 = vadd.f32 %v580, %v1037
        %1039 = vmatprep.mubr.bf16.mxu0 0
        %1040 = vmatmul.mubr.bf16.gmra.mrb[0].mxu0 %v697
        %v1041 = vpop.f32.mrb[0].mxu0
        %v1042 = vadd.f32 %v576, %v1041
        %v1043 = vpop.f32.mrb[0].mxu0
        %v1044 = vadd.f32 %v580, %v1043
        %v1045 = vpop.f32.mrb[0].mxu0
        %v1046 = vadd.f32 %v576, %v1045
        %v1047 = vpop.f32.mrb[0].mxu0
        %v1048 = vadd.f32 %v580, %v1047
        %1049 = vmatprep.mubr.bf16.mxu0 0
        %1050 = vmatmul.mubr.bf16.gmra.mrb[0].mxu0 %v700
        %v1051 = vpop.f32.mrb[0].mxu0
        %v1052 = vadd.f32 %v576, %v1051
        %v1053 = vpop.f32.mrb[0].mxu0
        %v1054 = vadd.f32 %v580, %v1053
        %v1055 = vpop.f32.mrb[0].mxu0
        %v1056 = vadd.f32 %v576, %v1055
        %v1057 = vpop.f32.mrb[0].mxu0
        %v1058 = vadd.f32 %v580, %v1057
        %1059 = vmatprep.mubr.bf16.mxu0 0
        %1060 = vmatmul.mubr.bf16.gmra.mrb[0].mxu0 %v703
        %v1061 = vpop.f32.mrb[0].mxu0
        %v1062 = vadd.f32 %v576, %v1061
        %v1063 = vpop.f32.mrb[0].mxu0
        %v1064 = vadd.f32 %v580, %v1063
        %v1065 = vpop.f32.mrb[0].mxu0
        %v1066 = vadd.f32 %v576, %v1065
        %v1067 = vpop.f32.mrb[0].mxu0
        %v1068 = vadd.f32 %v580, %v1067
        %1069 = vmatprep.mubr.bf16.mxu0 0
        %1070 = vmatmul.mubr.bf16.gmra.mrb[0].mxu0 %v706
        %v1071 = vpop.f32.mrb[0].mxu0
        %v1072 = vadd.f32 %v576, %v1071
        %v1073 = vpop.f32.mrb[0].mxu0
        %v1074 = vadd.f32 %v580, %v1073
        %v1075 = vpop.f32.mrb[0].mxu0
        %v1076 = vadd.f32 %v576, %v1075
        %v1077 = vpop.f32.mrb[0].mxu0
        %v1078 = vadd.f32 %v580, %v1077
        %1079 = vmatprep.mubr.bf16.mxu0 0
        %1080 = vmatmul.mubr.bf16.gmra.mrb[0].mxu0 %v709
        %v1081 = vpop.f32.mrb[0].mxu0
        %v1082 = vadd.f32 %v576, %v1081
        %v1083 = vpop.f32.mrb[0].mxu0
        %v1084 = vadd.f32 %v580, %v1083
        %v1085 = vpop.f32.mrb[0].mxu0
        %v1086 = vadd.f32 %v576, %v1085
        %v1087 = vpop.f32.mrb[0].mxu0
        %v1088 = vadd.f32 %v580, %v1087
        %1089 = vmatprep.mubr.bf16.mxu0 0
        %1090 = vmatmul.mubr.bf16.gmra.mrb[0].mxu0 %v712
        %v1091 = vpop.f32.mrb[0].mxu0
        %v1092 = vadd.f32 %v576, %v1091
        %v1093 = vpop.f32.mrb[0].mxu0
        %v1094 = vadd.f32 %v580, %v1093
        %v1095 = vpop.f32.mrb[0].mxu0
        %v1096 = vadd.f32 %v576, %v1095
        %v1097 = vpop.f32.mrb[0].mxu0
        %v1098 = vadd.f32 %v580, %v1097
        %1099 = vdwg.mxu0
        %v1100 = vmax.f32 %v749, 0.0
        %v1101 = vmax.f32 %v751, 0.0
        %v1102 = vmax.f32 %v942, 0.0
        %v1103 = vmax.f32 %v944, 0.0
        %v1104 = vmax.f32 %v753, 0.0
        %v1105 = vmax.f32 %v755, 0.0
        %v1106 = vmax.f32 %v946, 0.0
        %v1107 = vmax.f32 %v948, 0.0
        %v1108 = vmax.f32 %v759, 0.0
        %v1109 = vmax.f32 %v761, 0.0
        %v1110 = vmax.f32 %v952, 0.0
        %v1111 = vmax.f32 %v954, 0.0
        %v1112 = vmax.f32 %v763, 0.0
        %v1113 = vmax.f32 %v765, 0.0
        %v1114 = vmax.f32 %v956, 0.0
        %v1115 = vmax.f32 %v958, 0.0
        %v1116 = vmax.f32 %v769, 0.0
        %v1117 = vmax.f32 %v771, 0.0
        %v1118 = vmax.f32 %v962, 0.0
        %v1119 = vmax.f32 %v964, 0.0
        %v1120 = vmax.f32 %v773, 0.0
        %v1121 = vmax.f32 %v775, 0.0
        %v1122 = vmax.f32 %v966, 0.0
        %v1123 = vmax.f32 %v968, 0.0
        %v1124 = vmax.f32 %v779, 0.0
        %v1125 = vmax.f32 %v781, 0.0
        %v1126 = vmax.f32 %v972, 0.0
        %v1127 = vmax.f32 %v974, 0.0
        %v1128 = vmax.f32 %v783, 0.0
        %v1129 = vmax.f32 %v785, 0.0
        %v1130 = vmax.f32 %v976, 0.0
        %v1131 = vmax.f32 %v978, 0.0
        %v1132 = vmax.f32 %v789, 0.0
        %v1133 = vmax.f32 %v791, 0.0
        %v1134 = vmax.f32 %v982, 0.0
        %v1135 = vmax.f32 %v984, 0.0
        %v1136 = vmax.f32 %v793, 0.0
        %v1137 = vmax.f32 %v795, 0.0
        %v1138 = vmax.f32 %v986, 0.0
        %v1139 = vmax.f32 %v988, 0.0
        %v1140 = vmax.f32 %v799, 0.0
        %v1141 = vmax.f32 %v801, 0.0
        %v1142 = vmax.f32 %v992, 0.0
        %v1143 = vmax.f32 %v994, 0.0
        %v1144 = vmax.f32 %v803, 0.0
        %v1145 = vmax.f32 %v805, 0.0
        %v1146 = vmax.f32 %v996, 0.0
        %v1147 = vmax.f32 %v998, 0.0
        %v1148 = vmax.f32 %v809, 0.0
        %v1149 = vmax.f32 %v811, 0.0
        %v1150 = vmax.f32 %v1002, 0.0
        %v1151 = vmax.f32 %v1004, 0.0
        %v1152 = vmax.f32 %v813, 0.0
        %v1153 = vmax.f32 %v815, 0.0
        %v1154 = vmax.f32 %v1006, 0.0
        %v1155 = vmax.f32 %v1008, 0.0
        %v1156 = vmax.f32 %v819, 0.0
        %v1157 = vmax.f32 %v821, 0.0
        %v1158 = vmax.f32 %v1012, 0.0
        %v1159 = vmax.f32 %v1014, 0.0
        %v1160 = vmax.f32 %v823, 0.0
        %v1161 = vmax.f32 %v825, 0.0
        %v1162 = vmax.f32 %v1016, 0.0
        %v1163 = vmax.f32 %v1018, 0.0
        %v1164 = vmax.f32 %v829, 0.0
        %v1165 = vmax.f32 %v831, 0.0
        %v1166 = vmax.f32 %v1022, 0.0
        %v1167 = vmax.f32 %v1024, 0.0
        %v1168 = vmax.f32 %v833, 0.0
        %v1169 = vmax.f32 %v835, 0.0
        %v1170 = vmax.f32 %v1026, 0.0
        %v1171 = vmax.f32 %v1028, 0.0
        %v1172 = vmax.f32 %v839, 0.0
        %v1173 = vmax.f32 %v841, 0.0
        %v1174 = vmax.f32 %v1032, 0.0
        %v1175 = vmax.f32 %v1034, 0.0
        %v1176 = vmax.f32 %v843, 0.0
        %v1177 = vmax.f32 %v845, 0.0
        %v1178 = vmax.f32 %v1036, 0.0
        %v1179 = vmax.f32 %v1038, 0.0
        %v1180 = vmax.f32 %v849, 0.0
        %v1181 = vmax.f32 %v851, 0.0
        %v1182 = vmax.f32 %v1042, 0.0
        %v1183 = vmax.f32 %v1044, 0.0
        %v1184 = vmax.f32 %v853, 0.0
        %v1185 = vmax.f32 %v855, 0.0
        %v1186 = vmax.f32 %v1046, 0.0
        %v1187 = vmax.f32 %v1048, 0.0
        %v1188 = vmax.f32 %v859, 0.0
        %v1189 = vmax.f32 %v861, 0.0
        %v1190 = vmax.f32 %v1052, 0.0
        %v1191 = vmax.f32 %v1054, 0.0
        %v1192 = vmax.f32 %v863, 0.0
        %v1193 = vmax.f32 %v865, 0.0
        %v1194 = vmax.f32 %v1056, 0.0
        %v1195 = vmax.f32 %v1058, 0.0
        %v1196 = vmax.f32 %v869, 0.0
        %v1197 = vmax.f32 %v871, 0.0
        %v1198 = vmax.f32 %v1062, 0.0
        %v1199 = vmax.f32 %v1064, 0.0
        %v1200 = vmax.f32 %v873, 0.0
        %v1201 = vmax.f32 %v875, 0.0
        %v1202 = vmax.f32 %v1066, 0.0
        %v1203 = vmax.f32 %v1068, 0.0
        %v1204 = vmax.f32 %v879, 0.0
        %v1205 = vmax.f32 %v881, 0.0
        %v1206 = vmax.f32 %v1072, 0.0
        %v1207 = vmax.f32 %v1074, 0.0
        %v1208 = vmax.f32 %v883, 0.0
        %v1209 = vmax.f32 %v885, 0.0
        %v1210 = vmax.f32 %v1076, 0.0
        %v1211 = vmax.f32 %v1078, 0.0
        %v1212 = vmax.f32 %v889, 0.0
        %v1213 = vmax.f32 %v891, 0.0
        %v1214 = vmax.f32 %v1082, 0.0
        %v1215 = vmax.f32 %v1084, 0.0
        %v1216 = vmax.f32 %v893, 0.0
        %v1217 = vmax.f32 %v895, 0.0
        %v1218 = vmax.f32 %v1086, 0.0
        %v1219 = vmax.f32 %v1088, 0.0
        %v1220 = vmax.f32 %v899, 0.0
        %v1221 = vmax.f32 %v901, 0.0
        %v1222 = vmax.f32 %v1092, 0.0
        %v1223 = vmax.f32 %v1094, 0.0
        %v1224 = vmax.f32 %v903, 0.0
        %v1225 = vmax.f32 %v905, 0.0
        %v1226 = vmax.f32 %v1096, 0.0
        %v1227 = vmax.f32 %v1098, 0.0
        %v1228 = vmax.f32 %v1100, %v1104
        %v1229 = vmax.f32 %v1228, %v1108
        %v1230 = vmax.f32 %v1229, %v1112
        %v1231 = vrot.slane %v1230, 4
        %v1232 = vmax.f32 %v1230, %v1231
        %v1233 = vrot.slane %v1232, 2
        %v1234 = vmax.f32 %v1232, %v1233
        %v1235 = vrot.slane %v1234, 1
        %v1236 = vmax.f32 %v1234, %v1235
        %v1237 = vmax.f32 %v1101, %v1105
        %v1238 = vmax.f32 %v1237, %v1109
        %v1239 = vmax.f32 %v1238, %v1113
        %v1240 = vrot.slane %v1239, 4
        %v1241 = vmax.f32 %v1239, %v1240
        %v1242 = vrot.slane %v1241, 2
        %v1243 = vmax.f32 %v1241, %v1242
        %v1244 = vrot.slane %v1243, 1
        %v1245 = vmax.f32 %v1243, %v1244
        %v1246 = vmax.f32 %v1102, %v1106
        %v1247 = vmax.f32 %v1246, %v1110
        %v1248 = vmax.f32 %v1247, %v1114
        %v1249 = vrot.slane %v1248, 4
        %v1250 = vmax.f32 %v1248, %v1249
        %v1251 = vrot.slane %v1250, 2
        %v1252 = vmax.f32 %v1250, %v1251
        %v1253 = vrot.slane %v1252, 1
        %v1254 = vmax.f32 %v1252, %v1253
        %v1255 = vmax.f32 %v1103, %v1107
        %v1256 = vmax.f32 %v1255, %v1111
        %v1257 = vmax.f32 %v1256, %v1115
        %v1258 = vrot.slane %v1257, 4
        %v1259 = vmax.f32 %v1257, %v1258
        %v1260 = vrot.slane %v1259, 2
        %v1261 = vmax.f32 %v1259, %v1260
        %v1262 = vrot.slane %v1261, 1
        %v1263 = vmax.f32 %v1261, %v1262
        %v1264 = vmax.f32 %v1116, %v1120
        %v1265 = vmax.f32 %v1264, %v1124
        %v1266 = vmax.f32 %v1265, %v1128
        %v1267 = vrot.slane %v1266, 4
        %v1268 = vmax.f32 %v1266, %v1267
        %v1269 = vrot.slane %v1268, 2
        %v1270 = vmax.f32 %v1268, %v1269
        %v1271 = vrot.slane %v1270, 1
        %v1272 = vmax.f32 %v1270, %v1271
        %v1273 = vmax.f32 %v1117, %v1121
        %v1274 = vmax.f32 %v1273, %v1125
        %v1275 = vmax.f32 %v1274, %v1129
        %v1276 = vrot.slane %v1275, 4
        %v1277 = vmax.f32 %v1275, %v1276
        %v1278 = vrot.slane %v1277, 2
        %v1279 = vmax.f32 %v1277, %v1278
        %v1280 = vrot.slane %v1279, 1
        %v1281 = vmax.f32 %v1279, %v1280
        %v1282 = vmax.f32 %v1118, %v1122
        %v1283 = vmax.f32 %v1282, %v1126
        %v1284 = vmax.f32 %v1283, %v1130
        %v1285 = vrot.slane %v1284, 4
        %v1286 = vmax.f32 %v1284, %v1285
        %v1287 = vrot.slane %v1286, 2
        %v1288 = vmax.f32 %v1286, %v1287
        %v1289 = vrot.slane %v1288, 1
        %v1290 = vmax.f32 %v1288, %v1289
        %v1291 = vmax.f32 %v1119, %v1123
        %v1292 = vmax.f32 %v1291, %v1127
        %v1293 = vmax.f32 %v1292, %v1131
        %v1294 = vrot.slane %v1293, 4
        %v1295 = vmax.f32 %v1293, %v1294
        %v1296 = vrot.slane %v1295, 2
        %v1297 = vmax.f32 %v1295, %v1296
        %v1298 = vrot.slane %v1297, 1
        %v1299 = vmax.f32 %v1297, %v1298
        %v1300 = vmax.f32 %v1132, %v1136
        %v1301 = vmax.f32 %v1300, %v1140
        %v1302 = vmax.f32 %v1301, %v1144
        %v1303 = vrot.slane %v1302, 4
        %v1304 = vmax.f32 %v1302, %v1303
        %v1305 = vrot.slane %v1304, 2
        %v1306 = vmax.f32 %v1304, %v1305
        %v1307 = vrot.slane %v1306, 1
        %v1308 = vmax.f32 %v1306, %v1307
        %v1309 = vmax.f32 %v1133, %v1137
        %v1310 = vmax.f32 %v1309, %v1141
        %v1311 = vmax.f32 %v1310, %v1145
        %v1312 = vrot.slane %v1311, 4
        %v1313 = vmax.f32 %v1311, %v1312
        %v1314 = vrot.slane %v1313, 2
        %v1315 = vmax.f32 %v1313, %v1314
        %v1316 = vrot.slane %v1315, 1
        %v1317 = vmax.f32 %v1315, %v1316
        %v1318 = vmax.f32 %v1134, %v1138
        %v1319 = vmax.f32 %v1318, %v1142
        %v1320 = vmax.f32 %v1319, %v1146
        %v1321 = vrot.slane %v1320, 4
        %v1322 = vmax.f32 %v1320, %v1321
        %v1323 = vrot.slane %v1322, 2
        %v1324 = vmax.f32 %v1322, %v1323
        %v1325 = vrot.slane %v1324, 1
        %v1326 = vmax.f32 %v1324, %v1325
        %v1327 = vmax.f32 %v1135, %v1139
        %v1328 = vmax.f32 %v1327, %v1143
        %v1329 = vmax.f32 %v1328, %v1147
        %v1330 = vrot.slane %v1329, 4
        %v1331 = vmax.f32 %v1329, %v1330
        %v1332 = vrot.slane %v1331, 2
        %v1333 = vmax.f32 %v1331, %v1332
        %v1334 = vrot.slane %v1333, 1
        %v1335 = vmax.f32 %v1333, %v1334
        %v1336 = vmax.f32 %v1148, %v1152
        %v1337 = vmax.f32 %v1336, %v1156
        %v1338 = vmax.f32 %v1337, %v1160
        %v1339 = vrot.slane %v1338, 4
        %v1340 = vmax.f32 %v1338, %v1339
        %v1341 = vrot.slane %v1340, 2
        %v1342 = vmax.f32 %v1340, %v1341
        %v1343 = vrot.slane %v1342, 1
        %v1344 = vmax.f32 %v1342, %v1343
        %v1345 = vmax.f32 %v1149, %v1153
        %v1346 = vmax.f32 %v1345, %v1157
        %v1347 = vmax.f32 %v1346, %v1161
        %v1348 = vrot.slane %v1347, 4
        %v1349 = vmax.f32 %v1347, %v1348
        %v1350 = vrot.slane %v1349, 2
        %v1351 = vmax.f32 %v1349, %v1350
        %v1352 = vrot.slane %v1351, 1
        %v1353 = vmax.f32 %v1351, %v1352
        %v1354 = vmax.f32 %v1150, %v1154
        %v1355 = vmax.f32 %v1354, %v1158
        %v1356 = vmax.f32 %v1355, %v1162
        %v1357 = vrot.slane %v1356, 4
        %v1358 = vmax.f32 %v1356, %v1357
        %v1359 = vrot.slane %v1358, 2
        %v1360 = vmax.f32 %v1358, %v1359
        %v1361 = vrot.slane %v1360, 1
        %v1362 = vmax.f32 %v1360, %v1361
        %v1363 = vmax.f32 %v1151, %v1155
        %v1364 = vmax.f32 %v1363, %v1159
        %v1365 = vmax.f32 %v1364, %v1163
        %v1366 = vrot.slane %v1365, 4
        %v1367 = vmax.f32 %v1365, %v1366
        %v1368 = vrot.slane %v1367, 2
        %v1369 = vmax.f32 %v1367, %v1368
        %v1370 = vrot.slane %v1369, 1
        %v1371 = vmax.f32 %v1369, %v1370
        %v1372 = vmax.f32 %v1164, %v1168
        %v1373 = vmax.f32 %v1372, %v1172
        %v1374 = vmax.f32 %v1373, %v1176
        %v1375 = vrot.slane %v1374, 4
        %v1376 = vmax.f32 %v1374, %v1375
        %v1377 = vrot.slane %v1376, 2
        %v1378 = vmax.f32 %v1376, %v1377
        %v1379 = vrot.slane %v1378, 1
        %v1380 = vmax.f32 %v1378, %v1379
        %v1381 = vmax.f32 %v1165, %v1169
        %v1382 = vmax.f32 %v1381, %v1173
        %v1383 = vmax.f32 %v1382, %v1177
        %v1384 = vrot.slane %v1383, 4
        %v1385 = vmax.f32 %v1383, %v1384
        %v1386 = vrot.slane %v1385, 2
        %v1387 = vmax.f32 %v1385, %v1386
        %v1388 = vrot.slane %v1387, 1
        %v1389 = vmax.f32 %v1387, %v1388
        %v1390 = vmax.f32 %v1166, %v1170
        %v1391 = vmax.f32 %v1390, %v1174
        %v1392 = vmax.f32 %v1391, %v1178
        %v1393 = vrot.slane %v1392, 4
        %v1394 = vmax.f32 %v1392, %v1393
        %v1395 = vrot.slane %v1394, 2
        %v1396 = vmax.f32 %v1394, %v1395
        %v1397 = vrot.slane %v1396, 1
        %v1398 = vmax.f32 %v1396, %v1397
        %v1399 = vmax.f32 %v1167, %v1171
        %v1400 = vmax.f32 %v1399, %v1175
        %v1401 = vmax.f32 %v1400, %v1179
        %v1402 = vrot.slane %v1401, 4
        %v1403 = vmax.f32 %v1401, %v1402
        %v1404 = vrot.slane %v1403, 2
        %v1405 = vmax.f32 %v1403, %v1404
        %v1406 = vrot.slane %v1405, 1
        %v1407 = vmax.f32 %v1405, %v1406
        %v1408 = vmax.f32 %v1180, %v1184
        %v1409 = vmax.f32 %v1408, %v1188
        %v1410 = vmax.f32 %v1409, %v1192
        %v1411 = vrot.slane %v1410, 4
        %v1412 = vmax.f32 %v1410, %v1411
        %v1413 = vrot.slane %v1412, 2
        %v1414 = vmax.f32 %v1412, %v1413
        %v1415 = vrot.slane %v1414, 1
        %v1416 = vmax.f32 %v1414, %v1415
        %v1417 = vmax.f32 %v1181, %v1185
        %v1418 = vmax.f32 %v1417, %v1189
        %v1419 = vmax.f32 %v1418, %v1193
        %v1420 = vrot.slane %v1419, 4
        %v1421 = vmax.f32 %v1419, %v1420
        %v1422 = vrot.slane %v1421, 2
        %v1423 = vmax.f32 %v1421, %v1422
        %v1424 = vrot.slane %v1423, 1
        %v1425 = vmax.f32 %v1423, %v1424
        %v1426 = vmax.f32 %v1182, %v1186
        %v1427 = vmax.f32 %v1426, %v1190
        %v1428 = vmax.f32 %v1427, %v1194
        %v1429 = vrot.slane %v1428, 4
        %v1430 = vmax.f32 %v1428, %v1429
        %v1431 = vrot.slane %v1430, 2
        %v1432 = vmax.f32 %v1430, %v1431
        %v1433 = vrot.slane %v1432, 1
        %v1434 = vmax.f32 %v1432, %v1433
        %v1435 = vmax.f32 %v1183, %v1187
        %v1436 = vmax.f32 %v1435, %v1191
        %v1437 = vmax.f32 %v1436, %v1195
        %v1438 = vrot.slane %v1437, 4
        %v1439 = vmax.f32 %v1437, %v1438
        %v1440 = vrot.slane %v1439, 2
        %v1441 = vmax.f32 %v1439, %v1440
        %v1442 = vrot.slane %v1441, 1
        %v1443 = vmax.f32 %v1441, %v1442
        %v1444 = vmax.f32 %v1196, %v1200
        %v1445 = vmax.f32 %v1444, %v1204
        %v1446 = vmax.f32 %v1445, %v1208
        %v1447 = vrot.slane %v1446, 4
        %v1448 = vmax.f32 %v1446, %v1447
        %v1449 = vrot.slane %v1448, 2
        %v1450 = vmax.f32 %v1448, %v1449
        %v1451 = vrot.slane %v1450, 1
        %v1452 = vmax.f32 %v1450, %v1451
        %v1453 = vmax.f32 %v1197, %v1201
        %v1454 = vmax.f32 %v1453, %v1205
        %v1455 = vmax.f32 %v1454, %v1209
        %v1456 = vrot.slane %v1455, 4
        %v1457 = vmax.f32 %v1455, %v1456
        %v1458 = vrot.slane %v1457, 2
        %v1459 = vmax.f32 %v1457, %v1458
        %v1460 = vrot.slane %v1459, 1
        %v1461 = vmax.f32 %v1459, %v1460
        %v1462 = vmax.f32 %v1198, %v1202
        %v1463 = vmax.f32 %v1462, %v1206
        %v1464 = vmax.f32 %v1463, %v1210
        %v1465 = vrot.slane %v1464, 4
        %v1466 = vmax.f32 %v1464, %v1465
        %v1467 = vrot.slane %v1466, 2
        %v1468 = vmax.f32 %v1466, %v1467
        %v1469 = vrot.slane %v1468, 1
        %v1470 = vmax.f32 %v1468, %v1469
        %v1471 = vmax.f32 %v1199, %v1203
        %v1472 = vmax.f32 %v1471, %v1207
        %v1473 = vmax.f32 %v1472, %v1211
        %v1474 = vrot.slane %v1473, 4
        %v1475 = vmax.f32 %v1473, %v1474
        %v1476 = vrot.slane %v1475, 2
        %v1477 = vmax.f32 %v1475, %v1476
        %v1478 = vrot.slane %v1477, 1
        %v1479 = vmax.f32 %v1477, %v1478
        %v1480 = vmax.f32 %v1212, %v1216
        %v1481 = vmax.f32 %v1480, %v1220
        %v1482 = vmax.f32 %v1481, %v1224
        %v1483 = vrot.slane %v1482, 4
        %v1484 = vmax.f32 %v1482, %v1483
        %v1485 = vrot.slane %v1484, 2
        %v1486 = vmax.f32 %v1484, %v1485
        %v1487 = vrot.slane %v1486, 1
        %v1488 = vmax.f32 %v1486, %v1487
        %v1489 = vmax.f32 %v1213, %v1217
        %v1490 = vmax.f32 %v1489, %v1221
        %v1491 = vmax.f32 %v1490, %v1225
        %v1492 = vrot.slane %v1491, 4
        %v1493 = vmax.f32 %v1491, %v1492
        %v1494 = vrot.slane %v1493, 2
        %v1495 = vmax.f32 %v1493, %v1494
        %v1496 = vrot.slane %v1495, 1
        %v1497 = vmax.f32 %v1495, %v1496
        %v1498 = vmax.f32 %v1214, %v1218
        %v1499 = vmax.f32 %v1498, %v1222
        %v1500 = vmax.f32 %v1499, %v1226
        %v1501 = vrot.slane %v1500, 4
        %v1502 = vmax.f32 %v1500, %v1501
        %v1503 = vrot.slane %v1502, 2
        %v1504 = vmax.f32 %v1502, %v1503
        %v1505 = vrot.slane %v1504, 1
        %v1506 = vmax.f32 %v1504, %v1505
        %v1507 = vmax.f32 %v1215, %v1219
        %v1508 = vmax.f32 %v1507, %v1223
        %v1509 = vmax.f32 %v1508, %v1227
        %v1510 = vrot.slane %v1509, 4
        %v1511 = vmax.f32 %v1509, %v1510
        %v1512 = vrot.slane %v1511, 2
        %v1513 = vmax.f32 %v1511, %v1512
        %v1514 = vrot.slane %v1513, 1
        %v1515 = vmax.f32 %v1513, %v1514
        %v1516 = vpack.c.bf16 %v1236, %v1236
        %v1517 = vpack.c.bf16 %v1245, %v1245
        %v1518 = vpack.c.bf16 %v1254, %v1254
        %v1519 = vpack.c.bf16 %v1263, %v1263
        %v1520 = vpack.c.bf16 %v1272, %v1272
        %v1521 = vpack.c.bf16 %v1281, %v1281
        %v1522 = vpack.c.bf16 %v1290, %v1290
        %v1523 = vpack.c.bf16 %v1299, %v1299
        %v1524 = vpack.c.bf16 %v1308, %v1308
        %v1525 = vpack.c.bf16 %v1317, %v1317
        %v1526 = vpack.c.bf16 %v1326, %v1326
        %v1527 = vpack.c.bf16 %v1335, %v1335
        %v1528 = vpack.c.bf16 %v1344, %v1344
        %v1529 = vpack.c.bf16 %v1353, %v1353
        %v1530 = vpack.c.bf16 %v1362, %v1362
        %v1531 = vpack.c.bf16 %v1371, %v1371
        %v1532 = vpack.c.bf16 %v1380, %v1380
        %v1533 = vpack.c.bf16 %v1389, %v1389
        %v1534 = vpack.c.bf16 %v1398, %v1398
        %v1535 = vpack.c.bf16 %v1407, %v1407
        %v1536 = vpack.c.bf16 %v1416, %v1416
        %v1537 = vpack.c.bf16 %v1425, %v1425
        %v1538 = vpack.c.bf16 %v1434, %v1434
        %v1539 = vpack.c.bf16 %v1443, %v1443
        %v1540 = vpack.c.bf16 %v1452, %v1452
        %v1541 = vpack.c.bf16 %v1461, %v1461
        %v1542 = vpack.c.bf16 %v1470, %v1470
        %v1543 = vpack.c.bf16 %v1479, %v1479
        %v1544 = vpack.c.bf16 %v1488, %v1488
        %v1545 = vpack.c.bf16 %v1497, %v1497
        %v1546 = vpack.c.bf16 %v1506, %v1506
        %v1547 = vpack.c.bf16 %v1515, %v1515
        %v1580 = vunpack.c.l.b16 %v1516
        %v1581 = vunpack.c.l.b16 %v1517
        %v1582 = vunpack.c.l.b16 %v1518
        %v1583 = vunpack.c.l.b16 %v1519
        %v1584 = vunpack.c.l.b16 %v1520
        %v1585 = vunpack.c.l.b16 %v1521
        %v1586 = vunpack.c.l.b16 %v1522
        %v1587 = vunpack.c.l.b16 %v1523
        %v1588 = vunpack.c.l.b16 %v1524
        %v1589 = vunpack.c.l.b16 %v1525
        %v1590 = vunpack.c.l.b16 %v1526
        %v1591 = vunpack.c.l.b16 %v1527
        %v1592 = vunpack.c.l.b16 %v1528
        %v1593 = vunpack.c.l.b16 %v1529
        %v1594 = vunpack.c.l.b16 %v1530
        %v1595 = vunpack.c.l.b16 %v1531
        %v1596 = vunpack.c.l.b16 %v1532
        %v1597 = vunpack.c.l.b16 %v1533
        %v1598 = vunpack.c.l.b16 %v1534
        %v1599 = vunpack.c.l.b16 %v1535
        %v1600 = vunpack.c.l.b16 %v1536
        %v1601 = vunpack.c.l.b16 %v1537
        %v1602 = vunpack.c.l.b16 %v1538
        %v1603 = vunpack.c.l.b16 %v1539
        %v1604 = vunpack.c.l.b16 %v1540
        %v1605 = vunpack.c.l.b16 %v1541
        %v1606 = vunpack.c.l.b16 %v1542
        %v1607 = vunpack.c.l.b16 %v1543
        %v1608 = vunpack.c.l.b16 %v1544
        %v1609 = vunpack.c.l.b16 %v1545
        %v1610 = vunpack.c.l.b16 %v1546
        %v1611 = vunpack.c.l.b16 %v1547
        %v1612 = vpack.c.b16 %v1581, %v1580
        %v1613 = vpack.c.b16 %v1583, %v1582
        %v1614 = vpack.c.b16 %v1585, %v1584
        %v1615 = vpack.c.b16 %v1587, %v1586
        %v1616 = vpack.c.b16 %v1589, %v1588
        %v1617 = vpack.c.b16 %v1591, %v1590
        %v1618 = vpack.c.b16 %v1593, %v1592
        %v1619 = vpack.c.b16 %v1595, %v1594
        %v1620 = vpack.c.b16 %v1597, %v1596
        %v1621 = vpack.c.b16 %v1599, %v1598
        %v1622 = vpack.c.b16 %v1601, %v1600
        %v1623 = vpack.c.b16 %v1603, %v1602
        %v1624 = vpack.c.b16 %v1605, %v1604
        %v1625 = vpack.c.b16 %v1607, %v1606
        %v1626 = vpack.c.b16 %v1609, %v1608
        %v1627 = vpack.c.b16 %v1611, %v1610
        %v1628 = vunpack.c.l.b16 %v1612
        %v1629 = vunpack.c.h.b16 %v1612
        %v1630 = vunpack.c.l.b16 %v1613
        %v1631 = vunpack.c.h.b16 %v1613
        %v1632 = vunpack.c.l.b16 %v1614
        %v1633 = vunpack.c.h.b16 %v1614
        %v1634 = vunpack.c.l.b16 %v1615
        %v1635 = vunpack.c.h.b16 %v1615
        %v1636 = vunpack.c.l.b16 %v1616
        %v1637 = vunpack.c.h.b16 %v1616
        %v1638 = vunpack.c.l.b16 %v1617
        %v1639 = vunpack.c.h.b16 %v1617
        %v1640 = vunpack.c.l.b16 %v1618
        %v1641 = vunpack.c.h.b16 %v1618
        %v1642 = vunpack.c.l.b16 %v1619
        %v1643 = vunpack.c.h.b16 %v1619
        %v1644 = vunpack.c.l.b16 %v1620
        %v1645 = vunpack.c.h.b16 %v1620
        %v1646 = vunpack.c.l.b16 %v1621
        %v1647 = vunpack.c.h.b16 %v1621
        %v1648 = vunpack.c.l.b16 %v1622
        %v1649 = vunpack.c.h.b16 %v1622
        %v1650 = vunpack.c.l.b16 %v1623
        %v1651 = vunpack.c.h.b16 %v1623
        %v1652 = vunpack.c.l.b16 %v1624
        %v1653 = vunpack.c.h.b16 %v1624
        %v1654 = vunpack.c.l.b16 %v1625
        %v1655 = vunpack.c.h.b16 %v1625
        %v1656 = vunpack.c.l.b16 %v1626
        %v1657 = vunpack.c.h.b16 %v1626
        %v1658 = vunpack.c.l.b16 %v1627
        %v1659 = vunpack.c.h.b16 %v1627
        %vm1660 = vcmask 1041409
        %v1661 = vsel %vm1660, %v1632, %v1628
        %vm1662 = vcmask 1042434
        %v1663 = vsel %vm1662, %v1636, %v1661
        %vm1664 = vcmask 1043459
        %v1665 = vsel %vm1664, %v1640, %v1663
        %vm1666 = vcmask 1044484
        %v1667 = vsel %vm1666, %v1644, %v1665
        %vm1668 = vcmask 1045509
        %v1669 = vsel %vm1668, %v1648, %v1667
        %vm1670 = vcmask 1046534
        %v1671 = vsel %vm1670, %v1652, %v1669
        %vm1672 = vcmask 1047559
        %v1673 = vsel %vm1672, %v1656, %v1671
        %v1674 = vsel %vm1660, %v1633, %v1629
        %v1675 = vsel %vm1662, %v1637, %v1674
        %v1676 = vsel %vm1664, %v1641, %v1675
        %v1677 = vsel %vm1666, %v1645, %v1676
        %v1678 = vsel %vm1668, %v1649, %v1677
        %v1679 = vsel %vm1670, %v1653, %v1678
        %v1680 = vsel %vm1672, %v1657, %v1679
        %v1681 = vsel %vm1660, %v1634, %v1630
        %v1682 = vsel %vm1662, %v1638, %v1681
        %v1683 = vsel %vm1664, %v1642, %v1682
        %v1684 = vsel %vm1666, %v1646, %v1683
        %v1685 = vsel %vm1668, %v1650, %v1684
        %v1686 = vsel %vm1670, %v1654, %v1685
        %v1687 = vsel %vm1672, %v1658, %v1686
        %v1688 = vsel %vm1660, %v1635, %v1631
        %v1689 = vsel %vm1662, %v1639, %v1688
        %v1690 = vsel %vm1664, %v1643, %v1689
        %v1691 = vsel %vm1666, %v1647, %v1690
        %v1692 = vsel %vm1668, %v1651, %v1691
        %v1693 = vsel %vm1670, %v1655, %v1692
        %v1694 = vsel %vm1672, %v1659, %v1693
        %v1695 = vpack.c.b16 %v1680, %v1673
        %v1696 = vpack.c.b16 %v1694, %v1687
        %1699 = vst [vmem:[%s220] sm:$0xff] %v1695
        %1700 = vst [vmem:[%s220 + $0x8] sm:$0xff] %v1696
        %s1701 = sand.u32 %s137, 1
        %s1702 = scalar_lea.sflag [#allocation3], %s1701
        %s1703 = sand.u32 %s137, 1
        %s1704 = smul.addr %s1703, 16
        %s1705 = scalar_lea.vmem [#allocation2], %s1704
        // Predicated region
        $region41: #{tpu_custom_call.1} parent=39 // pred_check
          %p1706 = pneg %p147
        $region42: #{tpu_custom_call.1} parent=39 // pred_check_branch
          %1708 = sbr.rel (%p1706) target = $region44
        $region43: #{tpu_custom_call.1} parent=39 // pred_region
          %s1710 = ssub.s32 256, 256
          %1711 = vsyncadd %s1702, %s1710
          %s1712 = smul.addr %s19, 4
          %s1713 = smul.addr %s1712, 64
          %s1714 = scalar_lea.hbm %s5, %s1713
          %s1716 = sshll.u32 %s1705, 4
          %s1717 = int_to_ptr.vmem [resolvable:$true] %s1716
          %1719 = dma.vmem_to_hbm [thread:$0]  %s1717, 256, %s1714, %s1702
        $region44: #{tpu_custom_call.1} parent=39 // pred_fallthru
          _
      $region40: #{tpu_custom_call.1} parent=5 // pred_fallthru
        _
      %p1720 = scmp.le.s32.totalorder 2, %s14
      // Predicated region
      $region45: #{tpu_custom_call.1} parent=5 // pred_check
        %p1721 = pneg %p1720
      $region46: #{tpu_custom_call.1} parent=5 // pred_check_branch
        %1723 = sbr.rel (%p1721) target = $region48
      $region47: #{tpu_custom_call.1} parent=5 // pred_region
        %s1724 = ssub.s32 %s14, 2
        // Predicated region
        $region49: #{tpu_custom_call.1} parent=47 // pred_check
          %p1725 = pneg %p153
        $region50: #{tpu_custom_call.1} parent=47 // pred_check_branch
          %1727 = sbr.rel (%p1725) target = $region52
        $region51: #{tpu_custom_call.1} parent=47 // pred_region
          %s1728 = sand.u32 %s138, 1
          %s1729 = scalar_lea.sflag [#allocation3], %s1728
          %s1730 = sand.u32 %s138, 1
          %s1731 = smul.addr %s1730, 16
          %s1732 = scalar_lea.vmem [#allocation2], %s1731
          %1733 = dma.done %s1729, 256
        $region52: #{tpu_custom_call.1} parent=47 // pred_fallthru
          _
      $region48: #{tpu_custom_call.1} parent=5 // pred_fallthru
        _
    $region6: #{tpu_custom_call.1} parent=1 // loop_footer
      %s18 = sadd.s32 1, %s14
    $region7: #{tpu_custom_call.1} parent=1 // loop_footer_branch
      %13 = sbr.rel target = $region3
    $region8: #{tpu_custom_call.1} parent=1 // loop_exit
      _
    %1734 = vsyncpa [#allocation3], 1
    %s1735 = scalar_lea.sflag [#allocation3], 1
    %1736 = vsyncpa %s1735, 1

</llo_original>
